<compile_context>
chip_gen: v7x
topology: tpu7x:2x2x1
jax: 0.10.0
libtpu: 0.0.40
codegen_flags: <defaults>
</compile_context>

<pallas_src>
import jax
import jax.numpy as jnp
from jax.experimental import pallas as pl
from jax.experimental.pallas import tpu as pltpu


# --------------------------------------------------------------------------
# Stage 1: embedding DMA-gather + context sum + fc1 + ReLU
# --------------------------------------------------------------------------
def _embed_fc1_kernel(x_ref,          # (B_p, C) int32, SMEM (scalar prefetch)
                      emb_hbm,        # (V, E_p) param dtype, HBM (pl.ANY)
                      w1t_ref,        # (E_p, H_p) param dtype, VMEM
                      b1_ref,         # (1, H_p) f32, VMEM
                      hid_ref,        # out: (B_p, H_p) f32
                      gbuf,           # scratch: (C, B_p, E_p) param dtype
                      sems):          # scratch: DMA sems (C, B_p)
    B_p, C = x_ref.shape
    V = emb_hbm.shape[0]

    # DMA-gather only the B*C rows actually indexed; emb never leaves HBM
    # wholesale.  Static unroll (toy B*C); issue all copies, then wait all,
    # so the row DMAs overlap each other.
    copies = []
    for c in range(C):
        for b in range(B_p):
            idx = jnp.clip(x_ref[b, c], 0, V - 1)
            cp = pltpu.make_async_copy(
                emb_hbm.at[pl.ds(idx, 1), :],      # (1, E_p) row in HBM
                gbuf.at[c, pl.ds(b, 1), :],        # (1, E_p) slot in VMEM
                sems.at[c, b],
            )
            cp.start()
            copies.append(cp)
    for cp in copies:
        cp.wait()

    # Context sum in f32 (matches the f32 reference accumulation).
    acc = gbuf[0].astype(jnp.float32)
    for c in range(1, C):
        acc = acc + gbuf[c].astype(jnp.float32)

    # fc1 + ReLU, f32 accumulation on the MXU.
    hid = jnp.dot(acc.astype(w1t_ref.dtype), w1t_ref[...],
                  preferred_element_type=jnp.float32) + b1_ref[...]
    hid_ref[...] = jnp.maximum(hid, 0.0)


# --------------------------------------------------------------------------
# Stage 2: fc2, vocab-tiled weight stream (parallelizable grid axis)
# --------------------------------------------------------------------------
def _fc2_kernel(hid_ref,              # (B_p, H_p) f32 (grid-invariant)
                w2t_ref,               # (H_p, TV) param dtype  [vocab tile]
                b2_ref,                # (1, TV) f32            [vocab tile]
                out_ref):              # (B_p, TV) f32
    h = hid_ref[...].astype(w2t_ref.dtype)
    out_ref[...] = (jnp.dot(h, w2t_ref[...],
                            preferred_element_type=jnp.float32)
                    + b2_ref[...]).astype(out_ref.dtype)


def _rup(n, m):
    return ((n + m - 1) // m) * m


def _pad2(a, rows, cols):
    return jnp.pad(a, ((0, rows - a.shape[0]), (0, cols - a.shape[1])))


def cbow_forward(x, emb, w1, b1, w2, b2, *, v_tile=512,
                 param_dtype=jnp.bfloat16):
    B, C = x.shape
    V, E = emb.shape
    H = w1.shape[0]

    B_p = _rup(B, 8)          # sublane-aligned batch -> unmasked stores
    E_p = _rup(E, 128)
    H_p = _rup(H, 128)
    TV = v_tile               # multiple of 256 fills the v6e/v7x MXU
    V_p = _rup(V, TV)

    # Host-side layout prep: pad to lane-dense widths, pre-transpose weights,
    # cast the streamed weights to bf16 (biases stay f32).
    x_p = jnp.pad(x.astype(jnp.int32), ((0, B_p - B), (0, 0)))
    emb_p = _pad2(emb, V, E_p).astype(param_dtype)              # (V, E_p)
    w1t_p = _pad2(w1.T, E_p, H_p).astype(param_dtype)           # (E_p, H_p)
    b1_p = jnp.pad(b1, (0, H_p - H)).reshape(1, H_p).astype(jnp.float32)
    w2t_p = _pad2(w2.T, H_p, V_p).astype(param_dtype)           # (H_p, V_p)
    b2_p = jnp.pad(b2, (0, V_p - V)).reshape(1, V_p).astype(jnp.float32)

    # ---- Stage 1: gather + sum + fc1 + ReLU (single grid step) ----
    hidden = pl.pallas_call(
        _embed_fc1_kernel,
        out_shape=jax.ShapeDtypeStruct((B_p, H_p), jnp.float32),
        grid_spec=pltpu.PrefetchScalarGridSpec(
            num_scalar_prefetch=1,                      # x -> SMEM
            grid=(1,),
            in_specs=[
                pl.BlockSpec(memory_space=pl.ANY),              # emb in HBM
                pl.BlockSpec((E_p, H_p), lambda i, x: (0, 0)),  # w1t
                pl.BlockSpec((1, H_p), lambda i, x: (0, 0)),    # b1
            ],
            out_specs=pl.BlockSpec((B_p, H_p), lambda i, x: (0, 0)),
            scratch_shapes=[
                pltpu.VMEM((C, B_p, E_p), param_dtype),  # gathered rows
                pltpu.SemaphoreType.DMA((C, B_p)),
            ],
        ),
        compiler_params=pltpu.CompilerParams(
            dimension_semantics=("arbitrary",),
        ),
    )(x_p, emb_p, w1t_p, b1_p)

    # ---- Stage 2: fc2 over vocab tiles; no cross-tile state -> "parallel"
    # so v7x's two TensorCores split the V axis. ----
    out_p = pl.pallas_call(
        _fc2_kernel,
        out_shape=jax.ShapeDtypeStruct((B_p, V_p), jnp.float32),
        grid=(V_p // TV,),
        in_specs=[
            pl.BlockSpec((B_p, H_p), lambda v: (0, 0)),   # hidden (invariant)
            pl.BlockSpec((H_p, TV), lambda v: (0, v)),    # w2t tile (stream)
            pl.BlockSpec((1, TV), lambda v: (0, v)),      # b2 tile
        ],
        out_specs=pl.BlockSpec((B_p, TV), lambda v: (0, v)),
        compiler_params=pltpu.CompilerParams(
            dimension_semantics=("parallel",),
            # Budget that also fits v7x (64 MiB physical per TC).
            vmem_limit_bytes=48 * 1024 * 1024,
        ),
    )(hidden, w2t_p, b2_p)

    return out_p[:B, :V]


def cbow_reference(x, emb, w1, b1, w2, b2):
    embedded = emb[x].sum(axis=1)
    hidden = jnp.maximum(embedded @ w1.T + b1, 0.0)
    return hidden @ w2.T + b2


if __name__ == "__main__":
    # Hyperparameters from the PyTorch script: vocab = {'hello','world','goodbye'}
    vocab_size = 3
    embedding_dim = 10
    hidden_dim = 10
    batch = 4          # 4 training pairs in `data`
    context_len = 2    # two context words -> exercises the .sum(dim=1)

    key = jax.random.PRNGKey(0)
    k_emb, k_w1, k_b1, k_w2, k_b2, k_x = jax.random.split(key, 6)

    emb = jax.random.normal(k_emb, (vocab_size, embedding_dim), jnp.float32)
    w1 = jax.random.normal(k_w1, (hidden_dim, embedding_dim), jnp.float32) * 0.3
    b1 = jax.random.normal(k_b1, (hidden_dim,), jnp.float32) * 0.1
    w2 = jax.random.normal(k_w2, (vocab_size, hidden_dim), jnp.float32) * 0.3
    b2 = jax.random.normal(k_b2, (vocab_size,), jnp.float32) * 0.1

    x = jax.random.randint(k_x, (batch, context_len), 0, vocab_size, jnp.int32)

    ref = cbow_reference(x, emb, w1, b1, w2, b2)

    # f32 weights: bit-exact path for correctness.
    out_f32 = jax.block_until_ready(
        cbow_forward(x, emb, w1, b1, w2, b2, param_dtype=jnp.float32))
    assert out_f32.shape == (batch, vocab_size)
    assert jnp.allclose(out_f32, ref, atol=1e-5, rtol=1e-5), "f32 mismatch"

    # Default bf16 weight-streaming path (what you'd run at real sizes).
    out_bf16 = jax.block_until_ready(cbow_forward(x, emb, w1, b1, w2, b2))
    assert out_bf16.shape == (batch, vocab_size)
    assert jnp.allclose(out_bf16, ref, atol=5e-2, rtol=5e-2), "bf16 mismatch"

    print("KERNEL_OK")
</pallas_src>

<mosaic_0001>
module attributes {stable_mosaic.version = 11 : i64} {
  func.func @_embed_fc1_kernel(%arg0: i32, %arg1: memref<8x2xi32, #tpu.memory_space<smem>>, %arg2: memref<3x128xf32, #tpu.memory_space<any>>, %arg3: memref<128x128xf32, #tpu.memory_space<vmem>>, %arg4: memref<1x128xf32, #tpu.memory_space<vmem>>, %arg5: memref<8x128xf32, #tpu.memory_space<vmem>>, %arg6: memref<2x8x128xf32, #tpu.memory_space<vmem>>, %arg7: memref<2x8x!tpu.dma_semaphore, #tpu.memory_space<semaphore_mem>>) attributes {dimension_semantics = [#tpu.dimension_semantics<arbitrary>], iteration_bounds = array<i64: 1>, scalar_prefetch = 1 : i64, scratch_operands = 2 : i64, tpu.core_type = #tpu.core_type<tc>, window_params = [{}, {pipeline_mode = #tpu.pipeline_mode<synchronous>, transform_indices = @transform_1, window_bounds = array<i64: 128, 128>}, {pipeline_mode = #tpu.pipeline_mode<synchronous>, transform_indices = @transform_2, window_bounds = array<i64: 1, 128>}, {pipeline_mode = #tpu.pipeline_mode<synchronous>, transform_indices = @transform_3, window_bounds = array<i64: 8, 128>}]} {
    %c0 = arith.constant 0 : index
    %c0_0 = arith.constant 0 : index
    %0 = memref.load %arg1[%c0, %c0_0] : memref<8x2xi32, #tpu.memory_space<smem>>
    %c0_i32 = arith.constant 0 : i32
    %c2_i32 = arith.constant 2 : i32
    %1 = arith.maxsi %c0_i32, %0 : i32
    %2 = arith.minsi %c2_i32, %1 : i32
    %c0_i32_1 = arith.constant 0 : i32
    %c0_i32_2 = arith.constant 0 : i32
    %c0_i32_3 = arith.constant 0 : i32
    %c0_i32_4 = arith.constant 0 : i32
    %3 = tpu.memref_slice %arg2[%2, %c0_i32_4] : memref<3x128xf32, #tpu.memory_space<any>> -> memref<1x128xf32, #tpu.memory_space<any>>
    %c0_i32_5 = arith.constant 0 : i32
    %c0_i32_6 = arith.constant 0 : i32
    %4 = tpu.memref_slice %arg6[%c0_i32_1, %c0_i32_5, %c0_i32_6] : memref<2x8x128xf32, #tpu.memory_space<vmem>> -> memref<1x1x128xf32, #tpu.memory_space<vmem>>
    %5 = tpu.memref_squeeze %4 : memref<1x1x128xf32, #tpu.memory_space<vmem>> -> memref<1x128xf32, #tpu.memory_space<vmem>>
    %6 = tpu.memref_slice %arg7[%c0_i32_2, %c0_i32_3] : memref<2x8x!tpu.dma_semaphore, #tpu.memory_space<semaphore_mem>> -> memref<1x1x!tpu.dma_semaphore, #tpu.memory_space<semaphore_mem>>
    %7 = tpu.memref_squeeze %6 : memref<1x1x!tpu.dma_semaphore, #tpu.memory_space<semaphore_mem>> -> memref<!tpu.dma_semaphore, #tpu.memory_space<semaphore_mem>>
    tpu.enqueue_dma source(%3 : memref<1x128xf32, #tpu.memory_space<any>>) target(%5 : memref<1x128xf32, #tpu.memory_space<vmem>>) target_semaphore(%7 : memref<!tpu.dma_semaphore, #tpu.memory_space<semaphore_mem>>)
    %c1 = arith.constant 1 : index
    %c0_7 = arith.constant 0 : index
    %8 = memref.load %arg1[%c1, %c0_7] : memref<8x2xi32, #tpu.memory_space<smem>>
    %c0_i32_8 = arith.constant 0 : i32
    %c2_i32_9 = arith.constant 2 : i32
    %9 = arith.maxsi %c0_i32_8, %8 : i32
    %10 = arith.minsi %c2_i32_9, %9 : i32
    %c0_i32_10 = arith.constant 0 : i32
    %c0_i32_11 = arith.constant 0 : i32
    %c1_i32 = arith.constant 1 : i32
    %c0_i32_12 = arith.constant 0 : i32
    %11 = tpu.memref_slice %arg2[%10, %c0_i32_12] : memref<3x128xf32, #tpu.memory_space<any>> -> memref<1x128xf32, #tpu.memory_space<any>>
    %c1_i32_13 = arith.constant 1 : i32
    %c0_i32_14 = arith.constant 0 : i32
    %12 = tpu.memref_slice %arg6[%c0_i32_10, %c1_i32_13, %c0_i32_14] : memref<2x8x128xf32, #tpu.memory_space<vmem>> -> memref<1x1x128xf32, #tpu.memory_space<vmem>>
    %13 = tpu.memref_squeeze %12 : memref<1x1x128xf32, #tpu.memory_space<vmem>> -> memref<1x128xf32, #tpu.memory_space<vmem>>
    %14 = tpu.memref_slice %arg7[%c0_i32_11, %c1_i32] : memref<2x8x!tpu.dma_semaphore, #tpu.memory_space<semaphore_mem>> -> memref<1x1x!tpu.dma_semaphore, #tpu.memory_space<semaphore_mem>>
    %15 = tpu.memref_squeeze %14 : memref<1x1x!tpu.dma_semaphore, #tpu.memory_space<semaphore_mem>> -> memref<!tpu.dma_semaphore, #tpu.memory_space<semaphore_mem>>
    tpu.enqueue_dma source(%11 : memref<1x128xf32, #tpu.memory_space<any>>) target(%13 : memref<1x128xf32, #tpu.memory_space<vmem>>) target_semaphore(%15 : memref<!tpu.dma_semaphore, #tpu.memory_space<semaphore_mem>>)
    %c2 = arith.constant 2 : index
    %c0_15 = arith.constant 0 : index
    %16 = memref.load %arg1[%c2, %c0_15] : memref<8x2xi32, #tpu.memory_space<smem>>
    %c0_i32_16 = arith.constant 0 : i32
    %c2_i32_17 = arith.constant 2 : i32
    %17 = arith.maxsi %c0_i32_16, %16 : i32
    %18 = arith.minsi %c2_i32_17, %17 : i32
    %c0_i32_18 = arith.constant 0 : i32
    %c0_i32_19 = arith.constant 0 : i32
    %c2_i32_20 = arith.constant 2 : i32
    %c0_i32_21 = arith.constant 0 : i32
    %19 = tpu.memref_slice %arg2[%18, %c0_i32_21] : memref<3x128xf32, #tpu.memory_space<any>> -> memref<1x128xf32, #tpu.memory_space<any>>
    %c2_i32_22 = arith.constant 2 : i32
    %c0_i32_23 = arith.constant 0 : i32
    %20 = tpu.memref_slice %arg6[%c0_i32_18, %c2_i32_22, %c0_i32_23] : memref<2x8x128xf32, #tpu.memory_space<vmem>> -> memref<1x1x128xf32, #tpu.memory_space<vmem>>
    %21 = tpu.memref_squeeze %20 : memref<1x1x128xf32, #tpu.memory_space<vmem>> -> memref<1x128xf32, #tpu.memory_space<vmem>>
    %22 = tpu.memref_slice %arg7[%c0_i32_19, %c2_i32_20] : memref<2x8x!tpu.dma_semaphore, #tpu.memory_space<semaphore_mem>> -> memref<1x1x!tpu.dma_semaphore, #tpu.memory_space<semaphore_mem>>
    %23 = tpu.memref_squeeze %22 : memref<1x1x!tpu.dma_semaphore, #tpu.memory_space<semaphore_mem>> -> memref<!tpu.dma_semaphore, #tpu.memory_space<semaphore_mem>>
    tpu.enqueue_dma source(%19 : memref<1x128xf32, #tpu.memory_space<any>>) target(%21 : memref<1x128xf32, #tpu.memory_space<vmem>>) target_semaphore(%23 : memref<!tpu.dma_semaphore, #tpu.memory_space<semaphore_mem>>)
    %c3 = arith.constant 3 : index
    %c0_24 = arith.constant 0 : index
    %24 = memref.load %arg1[%c3, %c0_24] : memref<8x2xi32, #tpu.memory_space<smem>>
    %c0_i32_25 = arith.constant 0 : i32
    %c2_i32_26 = arith.constant 2 : i32
    %25 = arith.maxsi %c0_i32_25, %24 : i32
    %26 = arith.minsi %c2_i32_26, %25 : i32
    %c0_i32_27 = arith.constant 0 : i32
    %c0_i32_28 = arith.constant 0 : i32
    %c3_i32 = arith.constant 3 : i32
    %c0_i32_29 = arith.constant 0 : i32
    %27 = tpu.memref_slice %arg2[%26, %c0_i32_29] : memref<3x128xf32, #tpu.memory_space<any>> -> memref<1x128xf32, #tpu.memory_space<any>>
    %c3_i32_30 = arith.constant 3 : i32
    %c0_i32_31 = arith.constant 0 : i32
    %28 = tpu.memref_slice %arg6[%c0_i32_27, %c3_i32_30, %c0_i32_31] : memref<2x8x128xf32, #tpu.memory_space<vmem>> -> memref<1x1x128xf32, #tpu.memory_space<vmem>>
    %29 = tpu.memref_squeeze %28 : memref<1x1x128xf32, #tpu.memory_space<vmem>> -> memref<1x128xf32, #tpu.memory_space<vmem>>
    %30 = tpu.memref_slice %arg7[%c0_i32_28, %c3_i32] : memref<2x8x!tpu.dma_semaphore, #tpu.memory_space<semaphore_mem>> -> memref<1x1x!tpu.dma_semaphore, #tpu.memory_space<semaphore_mem>>
    %31 = tpu.memref_squeeze %30 : memref<1x1x!tpu.dma_semaphore, #tpu.memory_space<semaphore_mem>> -> memref<!tpu.dma_semaphore, #tpu.memory_space<semaphore_mem>>
    tpu.enqueue_dma source(%27 : memref<1x128xf32, #tpu.memory_space<any>>) target(%29 : memref<1x128xf32, #tpu.memory_space<vmem>>) target_semaphore(%31 : memref<!tpu.dma_semaphore, #tpu.memory_space<semaphore_mem>>)
    %c4 = arith.constant 4 : index
    %c0_32 = arith.constant 0 : index
    %32 = memref.load %arg1[%c4, %c0_32] : memref<8x2xi32, #tpu.memory_space<smem>>
    %c0_i32_33 = arith.constant 0 : i32
    %c2_i32_34 = arith.constant 2 : i32
    %33 = arith.maxsi %c0_i32_33, %32 : i32
    %34 = arith.minsi %c2_i32_34, %33 : i32
    %c0_i32_35 = arith.constant 0 : i32
    %c0_i32_36 = arith.constant 0 : i32
    %c4_i32 = arith.constant 4 : i32
    %c0_i32_37 = arith.constant 0 : i32
    %35 = tpu.memref_slice %arg2[%34, %c0_i32_37] : memref<3x128xf32, #tpu.memory_space<any>> -> memref<1x128xf32, #tpu.memory_space<any>>
    %c4_i32_38 = arith.constant 4 : i32
    %c0_i32_39 = arith.constant 0 : i32
    %36 = tpu.memref_slice %arg6[%c0_i32_35, %c4_i32_38, %c0_i32_39] : memref<2x8x128xf32, #tpu.memory_space<vmem>> -> memref<1x1x128xf32, #tpu.memory_space<vmem>>
    %37 = tpu.memref_squeeze %36 : memref<1x1x128xf32, #tpu.memory_space<vmem>> -> memref<1x128xf32, #tpu.memory_space<vmem>>
    %38 = tpu.memref_slice %arg7[%c0_i32_36, %c4_i32] : memref<2x8x!tpu.dma_semaphore, #tpu.memory_space<semaphore_mem>> -> memref<1x1x!tpu.dma_semaphore, #tpu.memory_space<semaphore_mem>>
    %39 = tpu.memref_squeeze %38 : memref<1x1x!tpu.dma_semaphore, #tpu.memory_space<semaphore_mem>> -> memref<!tpu.dma_semaphore, #tpu.memory_space<semaphore_mem>>
    tpu.enqueue_dma source(%35 : memref<1x128xf32, #tpu.memory_space<any>>) target(%37 : memref<1x128xf32, #tpu.memory_space<vmem>>) target_semaphore(%39 : memref<!tpu.dma_semaphore, #tpu.memory_space<semaphore_mem>>)
    %c5 = arith.constant 5 : index
    %c0_40 = arith.constant 0 : index
    %40 = memref.load %arg1[%c5, %c0_40] : memref<8x2xi32, #tpu.memory_space<smem>>
    %c0_i32_41 = arith.constant 0 : i32
    %c2_i32_42 = arith.constant 2 : i32
    %41 = arith.maxsi %c0_i32_41, %40 : i32
    %42 = arith.minsi %c2_i32_42, %41 : i32
    %c0_i32_43 = arith.constant 0 : i32
    %c0_i32_44 = arith.constant 0 : i32
    %c5_i32 = arith.constant 5 : i32
    %c0_i32_45 = arith.constant 0 : i32
    %43 = tpu.memref_slice %arg2[%42, %c0_i32_45] : memref<3x128xf32, #tpu.memory_space<any>> -> memref<1x128xf32, #tpu.memory_space<any>>
    %c5_i32_46 = arith.constant 5 : i32
    %c0_i32_47 = arith.constant 0 : i32
    %44 = tpu.memref_slice %arg6[%c0_i32_43, %c5_i32_46, %c0_i32_47] : memref<2x8x128xf32, #tpu.memory_space<vmem>> -> memref<1x1x128xf32, #tpu.memory_space<vmem>>
    %45 = tpu.memref_squeeze %44 : memref<1x1x128xf32, #tpu.memory_space<vmem>> -> memref<1x128xf32, #tpu.memory_space<vmem>>
    %46 = tpu.memref_slice %arg7[%c0_i32_44, %c5_i32] : memref<2x8x!tpu.dma_semaphore, #tpu.memory_space<semaphore_mem>> -> memref<1x1x!tpu.dma_semaphore, #tpu.memory_space<semaphore_mem>>
    %47 = tpu.memref_squeeze %46 : memref<1x1x!tpu.dma_semaphore, #tpu.memory_space<semaphore_mem>> -> memref<!tpu.dma_semaphore, #tpu.memory_space<semaphore_mem>>
    tpu.enqueue_dma source(%43 : memref<1x128xf32, #tpu.memory_space<any>>) target(%45 : memref<1x128xf32, #tpu.memory_space<vmem>>) target_semaphore(%47 : memref<!tpu.dma_semaphore, #tpu.memory_space<semaphore_mem>>)
    %c6 = arith.constant 6 : index
    %c0_48 = arith.constant 0 : index
    %48 = memref.load %arg1[%c6, %c0_48] : memref<8x2xi32, #tpu.memory_space<smem>>
    %c0_i32_49 = arith.constant 0 : i32
    %c2_i32_50 = arith.constant 2 : i32
    %49 = arith.maxsi %c0_i32_49, %48 : i32
    %50 = arith.minsi %c2_i32_50, %49 : i32
    %c0_i32_51 = arith.constant 0 : i32
    %c0_i32_52 = arith.constant 0 : i32
    %c6_i32 = arith.constant 6 : i32
    %c0_i32_53 = arith.constant 0 : i32
    %51 = tpu.memref_slice %arg2[%50, %c0_i32_53] : memref<3x128xf32, #tpu.memory_space<any>> -> memref<1x128xf32, #tpu.memory_space<any>>
    %c6_i32_54 = arith.constant 6 : i32
    %c0_i32_55 = arith.constant 0 : i32
    %52 = tpu.memref_slice %arg6[%c0_i32_51, %c6_i32_54, %c0_i32_55] : memref<2x8x128xf32, #tpu.memory_space<vmem>> -> memref<1x1x128xf32, #tpu.memory_space<vmem>>
    %53 = tpu.memref_squeeze %52 : memref<1x1x128xf32, #tpu.memory_space<vmem>> -> memref<1x128xf32, #tpu.memory_space<vmem>>
    %54 = tpu.memref_slice %arg7[%c0_i32_52, %c6_i32] : memref<2x8x!tpu.dma_semaphore, #tpu.memory_space<semaphore_mem>> -> memref<1x1x!tpu.dma_semaphore, #tpu.memory_space<semaphore_mem>>
    %55 = tpu.memref_squeeze %54 : memref<1x1x!tpu.dma_semaphore, #tpu.memory_space<semaphore_mem>> -> memref<!tpu.dma_semaphore, #tpu.memory_space<semaphore_mem>>
    tpu.enqueue_dma source(%51 : memref<1x128xf32, #tpu.memory_space<any>>) target(%53 : memref<1x128xf32, #tpu.memory_space<vmem>>) target_semaphore(%55 : memref<!tpu.dma_semaphore, #tpu.memory_space<semaphore_mem>>)
    %c7 = arith.constant 7 : index
    %c0_56 = arith.constant 0 : index
    %56 = memref.load %arg1[%c7, %c0_56] : memref<8x2xi32, #tpu.memory_space<smem>>
    %c0_i32_57 = arith.constant 0 : i32
    %c2_i32_58 = arith.constant 2 : i32
    %57 = arith.maxsi %c0_i32_57, %56 : i32
    %58 = arith.minsi %c2_i32_58, %57 : i32
    %c0_i32_59 = arith.constant 0 : i32
    %c0_i32_60 = arith.constant 0 : i32
    %c7_i32 = arith.constant 7 : i32
    %c0_i32_61 = arith.constant 0 : i32
    %59 = tpu.memref_slice %arg2[%58, %c0_i32_61] : memref<3x128xf32, #tpu.memory_space<any>> -> memref<1x128xf32, #tpu.memory_space<any>>
    %c7_i32_62 = arith.constant 7 : i32
    %c0_i32_63 = arith.constant 0 : i32
    %60 = tpu.memref_slice %arg6[%c0_i32_59, %c7_i32_62, %c0_i32_63] : memref<2x8x128xf32, #tpu.memory_space<vmem>> -> memref<1x1x128xf32, #tpu.memory_space<vmem>>
    %61 = tpu.memref_squeeze %60 : memref<1x1x128xf32, #tpu.memory_space<vmem>> -> memref<1x128xf32, #tpu.memory_space<vmem>>
    %62 = tpu.memref_slice %arg7[%c0_i32_60, %c7_i32] : memref<2x8x!tpu.dma_semaphore, #tpu.memory_space<semaphore_mem>> -> memref<1x1x!tpu.dma_semaphore, #tpu.memory_space<semaphore_mem>>
    %63 = tpu.memref_squeeze %62 : memref<1x1x!tpu.dma_semaphore, #tpu.memory_space<semaphore_mem>> -> memref<!tpu.dma_semaphore, #tpu.memory_space<semaphore_mem>>
    tpu.enqueue_dma source(%59 : memref<1x128xf32, #tpu.memory_space<any>>) target(%61 : memref<1x128xf32, #tpu.memory_space<vmem>>) target_semaphore(%63 : memref<!tpu.dma_semaphore, #tpu.memory_space<semaphore_mem>>)
    %c0_64 = arith.constant 0 : index
    %c1_65 = arith.constant 1 : index
    %64 = memref.load %arg1[%c0_64, %c1_65] : memref<8x2xi32, #tpu.memory_space<smem>>
    %c0_i32_66 = arith.constant 0 : i32
    %c2_i32_67 = arith.constant 2 : i32
    %65 = arith.maxsi %c0_i32_66, %64 : i32
    %66 = arith.minsi %c2_i32_67, %65 : i32
    %c1_i32_68 = arith.constant 1 : i32
    %c1_i32_69 = arith.constant 1 : i32
    %c0_i32_70 = arith.constant 0 : i32
    %c0_i32_71 = arith.constant 0 : i32
    %67 = tpu.memref_slice %arg2[%66, %c0_i32_71] : memref<3x128xf32, #tpu.memory_space<any>> -> memref<1x128xf32, #tpu.memory_space<any>>
    %c0_i32_72 = arith.constant 0 : i32
    %c0_i32_73 = arith.constant 0 : i32
    %68 = tpu.memref_slice %arg6[%c1_i32_68, %c0_i32_72, %c0_i32_73] : memref<2x8x128xf32, #tpu.memory_space<vmem>> -> memref<1x1x128xf32, #tpu.memory_space<vmem>>
    %69 = tpu.memref_squeeze %68 : memref<1x1x128xf32, #tpu.memory_space<vmem>> -> memref<1x128xf32, #tpu.memory_space<vmem>>
    %70 = tpu.memref_slice %arg7[%c1_i32_69, %c0_i32_70] : memref<2x8x!tpu.dma_semaphore, #tpu.memory_space<semaphore_mem>> -> memref<1x1x!tpu.dma_semaphore, #tpu.memory_space<semaphore_mem>>
    %71 = tpu.memref_squeeze %70 : memref<1x1x!tpu.dma_semaphore, #tpu.memory_space<semaphore_mem>> -> memref<!tpu.dma_semaphore, #tpu.memory_space<semaphore_mem>>
    tpu.enqueue_dma source(%67 : memref<1x128xf32, #tpu.memory_space<any>>) target(%69 : memref<1x128xf32, #tpu.memory_space<vmem>>) target_semaphore(%71 : memref<!tpu.dma_semaphore, #tpu.memory_space<semaphore_mem>>)
    %c1_74 = arith.constant 1 : index
    %c1_75 = arith.constant 1 : index
    %72 = memref.load %arg1[%c1_74, %c1_75] : memref<8x2xi32, #tpu.memory_space<smem>>
    %c0_i32_76 = arith.constant 0 : i32
    %c2_i32_77 = arith.constant 2 : i32
    %73 = arith.maxsi %c0_i32_76, %72 : i32
    %74 = arith.minsi %c2_i32_77, %73 : i32
    %c1_i32_78 = arith.constant 1 : i32
    %c1_i32_79 = arith.constant 1 : i32
    %c1_i32_80 = arith.constant 1 : i32
    %c0_i32_81 = arith.constant 0 : i32
    %75 = tpu.memref_slice %arg2[%74, %c0_i32_81] : memref<3x128xf32, #tpu.memory_space<any>> -> memref<1x128xf32, #tpu.memory_space<any>>
    %c1_i32_82 = arith.constant 1 : i32
    %c0_i32_83 = arith.constant 0 : i32
    %76 = tpu.memref_slice %arg6[%c1_i32_78, %c1_i32_82, %c0_i32_83] : memref<2x8x128xf32, #tpu.memory_space<vmem>> -> memref<1x1x128xf32, #tpu.memory_space<vmem>>
    %77 = tpu.memref_squeeze %76 : memref<1x1x128xf32, #tpu.memory_space<vmem>> -> memref<1x128xf32, #tpu.memory_space<vmem>>
    %78 = tpu.memref_slice %arg7[%c1_i32_79, %c1_i32_80] : memref<2x8x!tpu.dma_semaphore, #tpu.memory_space<semaphore_mem>> -> memref<1x1x!tpu.dma_semaphore, #tpu.memory_space<semaphore_mem>>
    %79 = tpu.memref_squeeze %78 : memref<1x1x!tpu.dma_semaphore, #tpu.memory_space<semaphore_mem>> -> memref<!tpu.dma_semaphore, #tpu.memory_space<semaphore_mem>>
    tpu.enqueue_dma source(%75 : memref<1x128xf32, #tpu.memory_space<any>>) target(%77 : memref<1x128xf32, #tpu.memory_space<vmem>>) target_semaphore(%79 : memref<!tpu.dma_semaphore, #tpu.memory_space<semaphore_mem>>)
    %c2_84 = arith.constant 2 : index
    %c1_85 = arith.constant 1 : index
    %80 = memref.load %arg1[%c2_84, %c1_85] : memref<8x2xi32, #tpu.memory_space<smem>>
    %c0_i32_86 = arith.constant 0 : i32
    %c2_i32_87 = arith.constant 2 : i32
    %81 = arith.maxsi %c0_i32_86, %80 : i32
    %82 = arith.minsi %c2_i32_87, %81 : i32
    %c1_i32_88 = arith.constant 1 : i32
    %c1_i32_89 = arith.constant 1 : i32
    %c2_i32_90 = arith.constant 2 : i32
    %c0_i32_91 = arith.constant 0 : i32
    %83 = tpu.memref_slice %arg2[%82, %c0_i32_91] : memref<3x128xf32, #tpu.memory_space<any>> -> memref<1x128xf32, #tpu.memory_space<any>>
    %c2_i32_92 = arith.constant 2 : i32
    %c0_i32_93 = arith.constant 0 : i32
    %84 = tpu.memref_slice %arg6[%c1_i32_88, %c2_i32_92, %c0_i32_93] : memref<2x8x128xf32, #tpu.memory_space<vmem>> -> memref<1x1x128xf32, #tpu.memory_space<vmem>>
    %85 = tpu.memref_squeeze %84 : memref<1x1x128xf32, #tpu.memory_space<vmem>> -> memref<1x128xf32, #tpu.memory_space<vmem>>
    %86 = tpu.memref_slice %arg7[%c1_i32_89, %c2_i32_90] : memref<2x8x!tpu.dma_semaphore, #tpu.memory_space<semaphore_mem>> -> memref<1x1x!tpu.dma_semaphore, #tpu.memory_space<semaphore_mem>>
    %87 = tpu.memref_squeeze %86 : memref<1x1x!tpu.dma_semaphore, #tpu.memory_space<semaphore_mem>> -> memref<!tpu.dma_semaphore, #tpu.memory_space<semaphore_mem>>
    tpu.enqueue_dma source(%83 : memref<1x128xf32, #tpu.memory_space<any>>) target(%85 : memref<1x128xf32, #tpu.memory_space<vmem>>) target_semaphore(%87 : memref<!tpu.dma_semaphore, #tpu.memory_space<semaphore_mem>>)
    %c3_94 = arith.constant 3 : index
    %c1_95 = arith.constant 1 : index
    %88 = memref.load %arg1[%c3_94, %c1_95] : memref<8x2xi32, #tpu.memory_space<smem>>
    %c0_i32_96 = arith.constant 0 : i32
    %c2_i32_97 = arith.constant 2 : i32
    %89 = arith.maxsi %c0_i32_96, %88 : i32
    %90 = arith.minsi %c2_i32_97, %89 : i32
    %c1_i32_98 = arith.constant 1 : i32
    %c1_i32_99 = arith.constant 1 : i32
    %c3_i32_100 = arith.constant 3 : i32
    %c0_i32_101 = arith.constant 0 : i32
    %91 = tpu.memref_slice %arg2[%90, %c0_i32_101] : memref<3x128xf32, #tpu.memory_space<any>> -> memref<1x128xf32, #tpu.memory_space<any>>
    %c3_i32_102 = arith.constant 3 : i32
    %c0_i32_103 = arith.constant 0 : i32
    %92 = tpu.memref_slice %arg6[%c1_i32_98, %c3_i32_102, %c0_i32_103] : memref<2x8x128xf32, #tpu.memory_space<vmem>> -> memref<1x1x128xf32, #tpu.memory_space<vmem>>
    %93 = tpu.memref_squeeze %92 : memref<1x1x128xf32, #tpu.memory_space<vmem>> -> memref<1x128xf32, #tpu.memory_space<vmem>>
    %94 = tpu.memref_slice %arg7[%c1_i32_99, %c3_i32_100] : memref<2x8x!tpu.dma_semaphore, #tpu.memory_space<semaphore_mem>> -> memref<1x1x!tpu.dma_semaphore, #tpu.memory_space<semaphore_mem>>
    %95 = tpu.memref_squeeze %94 : memref<1x1x!tpu.dma_semaphore, #tpu.memory_space<semaphore_mem>> -> memref<!tpu.dma_semaphore, #tpu.memory_space<semaphore_mem>>
    tpu.enqueue_dma source(%91 : memref<1x128xf32, #tpu.memory_space<any>>) target(%93 : memref<1x128xf32, #tpu.memory_space<vmem>>) target_semaphore(%95 : memref<!tpu.dma_semaphore, #tpu.memory_space<semaphore_mem>>)
    %c4_104 = arith.constant 4 : index
    %c1_105 = arith.constant 1 : index
    %96 = memref.load %arg1[%c4_104, %c1_105] : memref<8x2xi32, #tpu.memory_space<smem>>
    %c0_i32_106 = arith.constant 0 : i32
    %c2_i32_107 = arith.constant 2 : i32
    %97 = arith.maxsi %c0_i32_106, %96 : i32
    %98 = arith.minsi %c2_i32_107, %97 : i32
    %c1_i32_108 = arith.constant 1 : i32
    %c1_i32_109 = arith.constant 1 : i32
    %c4_i32_110 = arith.constant 4 : i32
    %c0_i32_111 = arith.constant 0 : i32
    %99 = tpu.memref_slice %arg2[%98, %c0_i32_111] : memref<3x128xf32, #tpu.memory_space<any>> -> memref<1x128xf32, #tpu.memory_space<any>>
    %c4_i32_112 = arith.constant 4 : i32
    %c0_i32_113 = arith.constant 0 : i32
    %100 = tpu.memref_slice %arg6[%c1_i32_108, %c4_i32_112, %c0_i32_113] : memref<2x8x128xf32, #tpu.memory_space<vmem>> -> memref<1x1x128xf32, #tpu.memory_space<vmem>>
    %101 = tpu.memref_squeeze %100 : memref<1x1x128xf32, #tpu.memory_space<vmem>> -> memref<1x128xf32, #tpu.memory_space<vmem>>
    %102 = tpu.memref_slice %arg7[%c1_i32_109, %c4_i32_110] : memref<2x8x!tpu.dma_semaphore, #tpu.memory_space<semaphore_mem>> -> memref<1x1x!tpu.dma_semaphore, #tpu.memory_space<semaphore_mem>>
    %103 = tpu.memref_squeeze %102 : memref<1x1x!tpu.dma_semaphore, #tpu.memory_space<semaphore_mem>> -> memref<!tpu.dma_semaphore, #tpu.memory_space<semaphore_mem>>
    tpu.enqueue_dma source(%99 : memref<1x128xf32, #tpu.memory_space<any>>) target(%101 : memref<1x128xf32, #tpu.memory_space<vmem>>) target_semaphore(%103 : memref<!tpu.dma_semaphore, #tpu.memory_space<semaphore_mem>>)
    %c5_114 = arith.constant 5 : index
    %c1_115 = arith.constant 1 : index
    %104 = memref.load %arg1[%c5_114, %c1_115] : memref<8x2xi32, #tpu.memory_space<smem>>
    %c0_i32_116 = arith.constant 0 : i32
    %c2_i32_117 = arith.constant 2 : i32
    %105 = arith.maxsi %c0_i32_116, %104 : i32
    %106 = arith.minsi %c2_i32_117, %105 : i32
    %c1_i32_118 = arith.constant 1 : i32
    %c1_i32_119 = arith.constant 1 : i32
    %c5_i32_120 = arith.constant 5 : i32
    %c0_i32_121 = arith.constant 0 : i32
    %107 = tpu.memref_slice %arg2[%106, %c0_i32_121] : memref<3x128xf32, #tpu.memory_space<any>> -> memref<1x128xf32, #tpu.memory_space<any>>
    %c5_i32_122 = arith.constant 5 : i32
    %c0_i32_123 = arith.constant 0 : i32
    %108 = tpu.memref_slice %arg6[%c1_i32_118, %c5_i32_122, %c0_i32_123] : memref<2x8x128xf32, #tpu.memory_space<vmem>> -> memref<1x1x128xf32, #tpu.memory_space<vmem>>
    %109 = tpu.memref_squeeze %108 : memref<1x1x128xf32, #tpu.memory_space<vmem>> -> memref<1x128xf32, #tpu.memory_space<vmem>>
    %110 = tpu.memref_slice %arg7[%c1_i32_119, %c5_i32_120] : memref<2x8x!tpu.dma_semaphore, #tpu.memory_space<semaphore_mem>> -> memref<1x1x!tpu.dma_semaphore, #tpu.memory_space<semaphore_mem>>
    %111 = tpu.memref_squeeze %110 : memref<1x1x!tpu.dma_semaphore, #tpu.memory_space<semaphore_mem>> -> memref<!tpu.dma_semaphore, #tpu.memory_space<semaphore_mem>>
    tpu.enqueue_dma source(%107 : memref<1x128xf32, #tpu.memory_space<any>>) target(%109 : memref<1x128xf32, #tpu.memory_space<vmem>>) target_semaphore(%111 : memref<!tpu.dma_semaphore, #tpu.memory_space<semaphore_mem>>)
    %c6_124 = arith.constant 6 : index
    %c1_125 = arith.constant 1 : index
    %112 = memref.load %arg1[%c6_124, %c1_125] : memref<8x2xi32, #tpu.memory_space<smem>>
    %c0_i32_126 = arith.constant 0 : i32
    %c2_i32_127 = arith.constant 2 : i32
    %113 = arith.maxsi %c0_i32_126, %112 : i32
    %114 = arith.minsi %c2_i32_127, %113 : i32
    %c1_i32_128 = arith.constant 1 : i32
    %c1_i32_129 = arith.constant 1 : i32
    %c6_i32_130 = arith.constant 6 : i32
    %c0_i32_131 = arith.constant 0 : i32
    %115 = tpu.memref_slice %arg2[%114, %c0_i32_131] : memref<3x128xf32, #tpu.memory_space<any>> -> memref<1x128xf32, #tpu.memory_space<any>>
    %c6_i32_132 = arith.constant 6 : i32
    %c0_i32_133 = arith.constant 0 : i32
    %116 = tpu.memref_slice %arg6[%c1_i32_128, %c6_i32_132, %c0_i32_133] : memref<2x8x128xf32, #tpu.memory_space<vmem>> -> memref<1x1x128xf32, #tpu.memory_space<vmem>>
    %117 = tpu.memref_squeeze %116 : memref<1x1x128xf32, #tpu.memory_space<vmem>> -> memref<1x128xf32, #tpu.memory_space<vmem>>
    %118 = tpu.memref_slice %arg7[%c1_i32_129, %c6_i32_130] : memref<2x8x!tpu.dma_semaphore, #tpu.memory_space<semaphore_mem>> -> memref<1x1x!tpu.dma_semaphore, #tpu.memory_space<semaphore_mem>>
    %119 = tpu.memref_squeeze %118 : memref<1x1x!tpu.dma_semaphore, #tpu.memory_space<semaphore_mem>> -> memref<!tpu.dma_semaphore, #tpu.memory_space<semaphore_mem>>
    tpu.enqueue_dma source(%115 : memref<1x128xf32, #tpu.memory_space<any>>) target(%117 : memref<1x128xf32, #tpu.memory_space<vmem>>) target_semaphore(%119 : memref<!tpu.dma_semaphore, #tpu.memory_space<semaphore_mem>>)
    %c7_134 = arith.constant 7 : index
    %c1_135 = arith.constant 1 : index
    %120 = memref.load %arg1[%c7_134, %c1_135] : memref<8x2xi32, #tpu.memory_space<smem>>
    %c0_i32_136 = arith.constant 0 : i32
    %c2_i32_137 = arith.constant 2 : i32
    %121 = arith.maxsi %c0_i32_136, %120 : i32
    %122 = arith.minsi %c2_i32_137, %121 : i32
    %c1_i32_138 = arith.constant 1 : i32
    %c1_i32_139 = arith.constant 1 : i32
    %c7_i32_140 = arith.constant 7 : i32
    %c0_i32_141 = arith.constant 0 : i32
    %123 = tpu.memref_slice %arg2[%122, %c0_i32_141] : memref<3x128xf32, #tpu.memory_space<any>> -> memref<1x128xf32, #tpu.memory_space<any>>
    %c7_i32_142 = arith.constant 7 : i32
    %c0_i32_143 = arith.constant 0 : i32
    %124 = tpu.memref_slice %arg6[%c1_i32_138, %c7_i32_142, %c0_i32_143] : memref<2x8x128xf32, #tpu.memory_space<vmem>> -> memref<1x1x128xf32, #tpu.memory_space<vmem>>
    %125 = tpu.memref_squeeze %124 : memref<1x1x128xf32, #tpu.memory_space<vmem>> -> memref<1x128xf32, #tpu.memory_space<vmem>>
    %126 = tpu.memref_slice %arg7[%c1_i32_139, %c7_i32_140] : memref<2x8x!tpu.dma_semaphore, #tpu.memory_space<semaphore_mem>> -> memref<1x1x!tpu.dma_semaphore, #tpu.memory_space<semaphore_mem>>
    %127 = tpu.memref_squeeze %126 : memref<1x1x!tpu.dma_semaphore, #tpu.memory_space<semaphore_mem>> -> memref<!tpu.dma_semaphore, #tpu.memory_space<semaphore_mem>>
    tpu.enqueue_dma source(%123 : memref<1x128xf32, #tpu.memory_space<any>>) target(%125 : memref<1x128xf32, #tpu.memory_space<vmem>>) target_semaphore(%127 : memref<!tpu.dma_semaphore, #tpu.memory_space<semaphore_mem>>)
    %c0_i32_144 = arith.constant 0 : i32
    %c0_i32_145 = arith.constant 0 : i32
    %c0_i32_146 = arith.constant 0 : i32
    %c0_i32_147 = arith.constant 0 : i32
    %128 = tpu.memref_slice %arg2[%2, %c0_i32_147] : memref<3x128xf32, #tpu.memory_space<any>> -> memref<1x128xf32, #tpu.memory_space<any>>
    %c0_i32_148 = arith.constant 0 : i32
    %c0_i32_149 = arith.constant 0 : i32
    %129 = tpu.memref_slice %arg6[%c0_i32_144, %c0_i32_148, %c0_i32_149] : memref<2x8x128xf32, #tpu.memory_space<vmem>> -> memref<1x1x128xf32, #tpu.memory_space<vmem>>
    %130 = tpu.memref_squeeze %129 : memref<1x1x128xf32, #tpu.memory_space<vmem>> -> memref<1x128xf32, #tpu.memory_space<vmem>>
    %131 = tpu.memref_slice %arg7[%c0_i32_145, %c0_i32_146] : memref<2x8x!tpu.dma_semaphore, #tpu.memory_space<semaphore_mem>> -> memref<1x1x!tpu.dma_semaphore, #tpu.memory_space<semaphore_mem>>
    %132 = tpu.memref_squeeze %131 : memref<1x1x!tpu.dma_semaphore, #tpu.memory_space<semaphore_mem>> -> memref<!tpu.dma_semaphore, #tpu.memory_space<semaphore_mem>>
    tpu.wait_dma2 semaphore(%132 : memref<!tpu.dma_semaphore, #tpu.memory_space<semaphore_mem>>) src(%128 : memref<1x128xf32, #tpu.memory_space<any>>) dst(%130 : memref<1x128xf32, #tpu.memory_space<vmem>>)
    %c0_i32_150 = arith.constant 0 : i32
    %c0_i32_151 = arith.constant 0 : i32
    %c1_i32_152 = arith.constant 1 : i32
    %c0_i32_153 = arith.constant 0 : i32
    %133 = tpu.memref_slice %arg2[%10, %c0_i32_153] : memref<3x128xf32, #tpu.memory_space<any>> -> memref<1x128xf32, #tpu.memory_space<any>>
    %c1_i32_154 = arith.constant 1 : i32
    %c0_i32_155 = arith.constant 0 : i32
    %134 = tpu.memref_slice %arg6[%c0_i32_150, %c1_i32_154, %c0_i32_155] : memref<2x8x128xf32, #tpu.memory_space<vmem>> -> memref<1x1x128xf32, #tpu.memory_space<vmem>>
    %135 = tpu.memref_squeeze %134 : memref<1x1x128xf32, #tpu.memory_space<vmem>> -> memref<1x128xf32, #tpu.memory_space<vmem>>
    %136 = tpu.memref_slice %arg7[%c0_i32_151, %c1_i32_152] : memref<2x8x!tpu.dma_semaphore, #tpu.memory_space<semaphore_mem>> -> memref<1x1x!tpu.dma_semaphore, #tpu.memory_space<semaphore_mem>>
    %137 = tpu.memref_squeeze %136 : memref<1x1x!tpu.dma_semaphore, #tpu.memory_space<semaphore_mem>> -> memref<!tpu.dma_semaphore, #tpu.memory_space<semaphore_mem>>
    tpu.wait_dma2 semaphore(%137 : memref<!tpu.dma_semaphore, #tpu.memory_space<semaphore_mem>>) src(%133 : memref<1x128xf32, #tpu.memory_space<any>>) dst(%135 : memref<1x128xf32, #tpu.memory_space<vmem>>)
    %c0_i32_156 = arith.constant 0 : i32
    %c0_i32_157 = arith.constant 0 : i32
    %c2_i32_158 = arith.constant 2 : i32
    %c0_i32_159 = arith.constant 0 : i32
    %138 = tpu.memref_slice %arg2[%18, %c0_i32_159] : memref<3x128xf32, #tpu.memory_space<any>> -> memref<1x128xf32, #tpu.memory_space<any>>
    %c2_i32_160 = arith.constant 2 : i32
    %c0_i32_161 = arith.constant 0 : i32
    %139 = tpu.memref_slice %arg6[%c0_i32_156, %c2_i32_160, %c0_i32_161] : memref<2x8x128xf32, #tpu.memory_space<vmem>> -> memref<1x1x128xf32, #tpu.memory_space<vmem>>
    %140 = tpu.memref_squeeze %139 : memref<1x1x128xf32, #tpu.memory_space<vmem>> -> memref<1x128xf32, #tpu.memory_space<vmem>>
    %141 = tpu.memref_slice %arg7[%c0_i32_157, %c2_i32_158] : memref<2x8x!tpu.dma_semaphore, #tpu.memory_space<semaphore_mem>> -> memref<1x1x!tpu.dma_semaphore, #tpu.memory_space<semaphore_mem>>
    %142 = tpu.memref_squeeze %141 : memref<1x1x!tpu.dma_semaphore, #tpu.memory_space<semaphore_mem>> -> memref<!tpu.dma_semaphore, #tpu.memory_space<semaphore_mem>>
    tpu.wait_dma2 semaphore(%142 : memref<!tpu.dma_semaphore, #tpu.memory_space<semaphore_mem>>) src(%138 : memref<1x128xf32, #tpu.memory_space<any>>) dst(%140 : memref<1x128xf32, #tpu.memory_space<vmem>>)
    %c0_i32_162 = arith.constant 0 : i32
    %c0_i32_163 = arith.constant 0 : i32
    %c3_i32_164 = arith.constant 3 : i32
    %c0_i32_165 = arith.constant 0 : i32
    %143 = tpu.memref_slice %arg2[%26, %c0_i32_165] : memref<3x128xf32, #tpu.memory_space<any>> -> memref<1x128xf32, #tpu.memory_space<any>>
    %c3_i32_166 = arith.constant 3 : i32
    %c0_i32_167 = arith.constant 0 : i32
    %144 = tpu.memref_slice %arg6[%c0_i32_162, %c3_i32_166, %c0_i32_167] : memref<2x8x128xf32, #tpu.memory_space<vmem>> -> memref<1x1x128xf32, #tpu.memory_space<vmem>>
    %145 = tpu.memref_squeeze %144 : memref<1x1x128xf32, #tpu.memory_space<vmem>> -> memref<1x128xf32, #tpu.memory_space<vmem>>
    %146 = tpu.memref_slice %arg7[%c0_i32_163, %c3_i32_164] : memref<2x8x!tpu.dma_semaphore, #tpu.memory_space<semaphore_mem>> -> memref<1x1x!tpu.dma_semaphore, #tpu.memory_space<semaphore_mem>>
    %147 = tpu.memref_squeeze %146 : memref<1x1x!tpu.dma_semaphore, #tpu.memory_space<semaphore_mem>> -> memref<!tpu.dma_semaphore, #tpu.memory_space<semaphore_mem>>
    tpu.wait_dma2 semaphore(%147 : memref<!tpu.dma_semaphore, #tpu.memory_space<semaphore_mem>>) src(%143 : memref<1x128xf32, #tpu.memory_space<any>>) dst(%145 : memref<1x128xf32, #tpu.memory_space<vmem>>)
    %c0_i32_168 = arith.constant 0 : i32
    %c0_i32_169 = arith.constant 0 : i32
    %c4_i32_170 = arith.constant 4 : i32
    %c0_i32_171 = arith.constant 0 : i32
    %148 = tpu.memref_slice %arg2[%34, %c0_i32_171] : memref<3x128xf32, #tpu.memory_space<any>> -> memref<1x128xf32, #tpu.memory_space<any>>
    %c4_i32_172 = arith.constant 4 : i32
    %c0_i32_173 = arith.constant 0 : i32
    %149 = tpu.memref_slice %arg6[%c0_i32_168, %c4_i32_172, %c0_i32_173] : memref<2x8x128xf32, #tpu.memory_space<vmem>> -> memref<1x1x128xf32, #tpu.memory_space<vmem>>
    %150 = tpu.memref_squeeze %149 : memref<1x1x128xf32, #tpu.memory_space<vmem>> -> memref<1x128xf32, #tpu.memory_space<vmem>>
    %151 = tpu.memref_slice %arg7[%c0_i32_169, %c4_i32_170] : memref<2x8x!tpu.dma_semaphore, #tpu.memory_space<semaphore_mem>> -> memref<1x1x!tpu.dma_semaphore, #tpu.memory_space<semaphore_mem>>
    %152 = tpu.memref_squeeze %151 : memref<1x1x!tpu.dma_semaphore, #tpu.memory_space<semaphore_mem>> -> memref<!tpu.dma_semaphore, #tpu.memory_space<semaphore_mem>>
    tpu.wait_dma2 semaphore(%152 : memref<!tpu.dma_semaphore, #tpu.memory_space<semaphore_mem>>) src(%148 : memref<1x128xf32, #tpu.memory_space<any>>) dst(%150 : memref<1x128xf32, #tpu.memory_space<vmem>>)
    %c0_i32_174 = arith.constant 0 : i32
    %c0_i32_175 = arith.constant 0 : i32
    %c5_i32_176 = arith.constant 5 : i32
    %c0_i32_177 = arith.constant 0 : i32
    %153 = tpu.memref_slice %arg2[%42, %c0_i32_177] : memref<3x128xf32, #tpu.memory_space<any>> -> memref<1x128xf32, #tpu.memory_space<any>>
    %c5_i32_178 = arith.constant 5 : i32
    %c0_i32_179 = arith.constant 0 : i32
    %154 = tpu.memref_slice %arg6[%c0_i32_174, %c5_i32_178, %c0_i32_179] : memref<2x8x128xf32, #tpu.memory_space<vmem>> -> memref<1x1x128xf32, #tpu.memory_space<vmem>>
    %155 = tpu.memref_squeeze %154 : memref<1x1x128xf32, #tpu.memory_space<vmem>> -> memref<1x128xf32, #tpu.memory_space<vmem>>
    %156 = tpu.memref_slice %arg7[%c0_i32_175, %c5_i32_176] : memref<2x8x!tpu.dma_semaphore, #tpu.memory_space<semaphore_mem>> -> memref<1x1x!tpu.dma_semaphore, #tpu.memory_space<semaphore_mem>>
    %157 = tpu.memref_squeeze %156 : memref<1x1x!tpu.dma_semaphore, #tpu.memory_space<semaphore_mem>> -> memref<!tpu.dma_semaphore, #tpu.memory_space<semaphore_mem>>
    tpu.wait_dma2 semaphore(%157 : memref<!tpu.dma_semaphore, #tpu.memory_space<semaphore_mem>>) src(%153 : memref<1x128xf32, #tpu.memory_space<any>>) dst(%155 : memref<1x128xf32, #tpu.memory_space<vmem>>)
    %c0_i32_180 = arith.constant 0 : i32
    %c0_i32_181 = arith.constant 0 : i32
    %c6_i32_182 = arith.constant 6 : i32
    %c0_i32_183 = arith.constant 0 : i32
    %158 = tpu.memref_slice %arg2[%50, %c0_i32_183] : memref<3x128xf32, #tpu.memory_space<any>> -> memref<1x128xf32, #tpu.memory_space<any>>
    %c6_i32_184 = arith.constant 6 : i32
    %c0_i32_185 = arith.constant 0 : i32
    %159 = tpu.memref_slice %arg6[%c0_i32_180, %c6_i32_184, %c0_i32_185] : memref<2x8x128xf32, #tpu.memory_space<vmem>> -> memref<1x1x128xf32, #tpu.memory_space<vmem>>
    %160 = tpu.memref_squeeze %159 : memref<1x1x128xf32, #tpu.memory_space<vmem>> -> memref<1x128xf32, #tpu.memory_space<vmem>>
    %161 = tpu.memref_slice %arg7[%c0_i32_181, %c6_i32_182] : memref<2x8x!tpu.dma_semaphore, #tpu.memory_space<semaphore_mem>> -> memref<1x1x!tpu.dma_semaphore, #tpu.memory_space<semaphore_mem>>
    %162 = tpu.memref_squeeze %161 : memref<1x1x!tpu.dma_semaphore, #tpu.memory_space<semaphore_mem>> -> memref<!tpu.dma_semaphore, #tpu.memory_space<semaphore_mem>>
    tpu.wait_dma2 semaphore(%162 : memref<!tpu.dma_semaphore, #tpu.memory_space<semaphore_mem>>) src(%158 : memref<1x128xf32, #tpu.memory_space<any>>) dst(%160 : memref<1x128xf32, #tpu.memory_space<vmem>>)
    %c0_i32_186 = arith.constant 0 : i32
    %c0_i32_187 = arith.constant 0 : i32
    %c7_i32_188 = arith.constant 7 : i32
    %c0_i32_189 = arith.constant 0 : i32
    %163 = tpu.memref_slice %arg2[%58, %c0_i32_189] : memref<3x128xf32, #tpu.memory_space<any>> -> memref<1x128xf32, #tpu.memory_space<any>>
    %c7_i32_190 = arith.constant 7 : i32
    %c0_i32_191 = arith.constant 0 : i32
    %164 = tpu.memref_slice %arg6[%c0_i32_186, %c7_i32_190, %c0_i32_191] : memref<2x8x128xf32, #tpu.memory_space<vmem>> -> memref<1x1x128xf32, #tpu.memory_space<vmem>>
    %165 = tpu.memref_squeeze %164 : memref<1x1x128xf32, #tpu.memory_space<vmem>> -> memref<1x128xf32, #tpu.memory_space<vmem>>
    %166 = tpu.memref_slice %arg7[%c0_i32_187, %c7_i32_188] : memref<2x8x!tpu.dma_semaphore, #tpu.memory_space<semaphore_mem>> -> memref<1x1x!tpu.dma_semaphore, #tpu.memory_space<semaphore_mem>>
    %167 = tpu.memref_squeeze %166 : memref<1x1x!tpu.dma_semaphore, #tpu.memory_space<semaphore_mem>> -> memref<!tpu.dma_semaphore, #tpu.memory_space<semaphore_mem>>
    tpu.wait_dma2 semaphore(%167 : memref<!tpu.dma_semaphore, #tpu.memory_space<semaphore_mem>>) src(%163 : memref<1x128xf32, #tpu.memory_space<any>>) dst(%165 : memref<1x128xf32, #tpu.memory_space<vmem>>)
    %c1_i32_192 = arith.constant 1 : i32
    %c1_i32_193 = arith.constant 1 : i32
    %c0_i32_194 = arith.constant 0 : i32
    %c0_i32_195 = arith.constant 0 : i32
    %168 = tpu.memref_slice %arg2[%66, %c0_i32_195] : memref<3x128xf32, #tpu.memory_space<any>> -> memref<1x128xf32, #tpu.memory_space<any>>
    %c0_i32_196 = arith.constant 0 : i32
    %c0_i32_197 = arith.constant 0 : i32
    %169 = tpu.memref_slice %arg6[%c1_i32_192, %c0_i32_196, %c0_i32_197] : memref<2x8x128xf32, #tpu.memory_space<vmem>> -> memref<1x1x128xf32, #tpu.memory_space<vmem>>
    %170 = tpu.memref_squeeze %169 : memref<1x1x128xf32, #tpu.memory_space<vmem>> -> memref<1x128xf32, #tpu.memory_space<vmem>>
    %171 = tpu.memref_slice %arg7[%c1_i32_193, %c0_i32_194] : memref<2x8x!tpu.dma_semaphore, #tpu.memory_space<semaphore_mem>> -> memref<1x1x!tpu.dma_semaphore, #tpu.memory_space<semaphore_mem>>
    %172 = tpu.memref_squeeze %171 : memref<1x1x!tpu.dma_semaphore, #tpu.memory_space<semaphore_mem>> -> memref<!tpu.dma_semaphore, #tpu.memory_space<semaphore_mem>>
    tpu.wait_dma2 semaphore(%172 : memref<!tpu.dma_semaphore, #tpu.memory_space<semaphore_mem>>) src(%168 : memref<1x128xf32, #tpu.memory_space<any>>) dst(%170 : memref<1x128xf32, #tpu.memory_space<vmem>>)
    %c1_i32_198 = arith.constant 1 : i32
    %c1_i32_199 = arith.constant 1 : i32
    %c1_i32_200 = arith.constant 1 : i32
    %c0_i32_201 = arith.constant 0 : i32
    %173 = tpu.memref_slice %arg2[%74, %c0_i32_201] : memref<3x128xf32, #tpu.memory_space<any>> -> memref<1x128xf32, #tpu.memory_space<any>>
    %c1_i32_202 = arith.constant 1 : i32
    %c0_i32_203 = arith.constant 0 : i32
    %174 = tpu.memref_slice %arg6[%c1_i32_198, %c1_i32_202, %c0_i32_203] : memref<2x8x128xf32, #tpu.memory_space<vmem>> -> memref<1x1x128xf32, #tpu.memory_space<vmem>>
    %175 = tpu.memref_squeeze %174 : memref<1x1x128xf32, #tpu.memory_space<vmem>> -> memref<1x128xf32, #tpu.memory_space<vmem>>
    %176 = tpu.memref_slice %arg7[%c1_i32_199, %c1_i32_200] : memref<2x8x!tpu.dma_semaphore, #tpu.memory_space<semaphore_mem>> -> memref<1x1x!tpu.dma_semaphore, #tpu.memory_space<semaphore_mem>>
    %177 = tpu.memref_squeeze %176 : memref<1x1x!tpu.dma_semaphore, #tpu.memory_space<semaphore_mem>> -> memref<!tpu.dma_semaphore, #tpu.memory_space<semaphore_mem>>
    tpu.wait_dma2 semaphore(%177 : memref<!tpu.dma_semaphore, #tpu.memory_space<semaphore_mem>>) src(%173 : memref<1x128xf32, #tpu.memory_space<any>>) dst(%175 : memref<1x128xf32, #tpu.memory_space<vmem>>)
    %c1_i32_204 = arith.constant 1 : i32
    %c1_i32_205 = arith.constant 1 : i32
    %c2_i32_206 = arith.constant 2 : i32
    %c0_i32_207 = arith.constant 0 : i32
    %178 = tpu.memref_slice %arg2[%82, %c0_i32_207] : memref<3x128xf32, #tpu.memory_space<any>> -> memref<1x128xf32, #tpu.memory_space<any>>
    %c2_i32_208 = arith.constant 2 : i32
    %c0_i32_209 = arith.constant 0 : i32
    %179 = tpu.memref_slice %arg6[%c1_i32_204, %c2_i32_208, %c0_i32_209] : memref<2x8x128xf32, #tpu.memory_space<vmem>> -> memref<1x1x128xf32, #tpu.memory_space<vmem>>
    %180 = tpu.memref_squeeze %179 : memref<1x1x128xf32, #tpu.memory_space<vmem>> -> memref<1x128xf32, #tpu.memory_space<vmem>>
    %181 = tpu.memref_slice %arg7[%c1_i32_205, %c2_i32_206] : memref<2x8x!tpu.dma_semaphore, #tpu.memory_space<semaphore_mem>> -> memref<1x1x!tpu.dma_semaphore, #tpu.memory_space<semaphore_mem>>
    %182 = tpu.memref_squeeze %181 : memref<1x1x!tpu.dma_semaphore, #tpu.memory_space<semaphore_mem>> -> memref<!tpu.dma_semaphore, #tpu.memory_space<semaphore_mem>>
    tpu.wait_dma2 semaphore(%182 : memref<!tpu.dma_semaphore, #tpu.memory_space<semaphore_mem>>) src(%178 : memref<1x128xf32, #tpu.memory_space<any>>) dst(%180 : memref<1x128xf32, #tpu.memory_space<vmem>>)
    %c1_i32_210 = arith.constant 1 : i32
    %c1_i32_211 = arith.constant 1 : i32
    %c3_i32_212 = arith.constant 3 : i32
    %c0_i32_213 = arith.constant 0 : i32
    %183 = tpu.memref_slice %arg2[%90, %c0_i32_213] : memref<3x128xf32, #tpu.memory_space<any>> -> memref<1x128xf32, #tpu.memory_space<any>>
    %c3_i32_214 = arith.constant 3 : i32
    %c0_i32_215 = arith.constant 0 : i32
    %184 = tpu.memref_slice %arg6[%c1_i32_210, %c3_i32_214, %c0_i32_215] : memref<2x8x128xf32, #tpu.memory_space<vmem>> -> memref<1x1x128xf32, #tpu.memory_space<vmem>>
    %185 = tpu.memref_squeeze %184 : memref<1x1x128xf32, #tpu.memory_space<vmem>> -> memref<1x128xf32, #tpu.memory_space<vmem>>
    %186 = tpu.memref_slice %arg7[%c1_i32_211, %c3_i32_212] : memref<2x8x!tpu.dma_semaphore, #tpu.memory_space<semaphore_mem>> -> memref<1x1x!tpu.dma_semaphore, #tpu.memory_space<semaphore_mem>>
    %187 = tpu.memref_squeeze %186 : memref<1x1x!tpu.dma_semaphore, #tpu.memory_space<semaphore_mem>> -> memref<!tpu.dma_semaphore, #tpu.memory_space<semaphore_mem>>
    tpu.wait_dma2 semaphore(%187 : memref<!tpu.dma_semaphore, #tpu.memory_space<semaphore_mem>>) src(%183 : memref<1x128xf32, #tpu.memory_space<any>>) dst(%185 : memref<1x128xf32, #tpu.memory_space<vmem>>)
    %c1_i32_216 = arith.constant 1 : i32
    %c1_i32_217 = arith.constant 1 : i32
    %c4_i32_218 = arith.constant 4 : i32
    %c0_i32_219 = arith.constant 0 : i32
    %188 = tpu.memref_slice %arg2[%98, %c0_i32_219] : memref<3x128xf32, #tpu.memory_space<any>> -> memref<1x128xf32, #tpu.memory_space<any>>
    %c4_i32_220 = arith.constant 4 : i32
    %c0_i32_221 = arith.constant 0 : i32
    %189 = tpu.memref_slice %arg6[%c1_i32_216, %c4_i32_220, %c0_i32_221] : memref<2x8x128xf32, #tpu.memory_space<vmem>> -> memref<1x1x128xf32, #tpu.memory_space<vmem>>
    %190 = tpu.memref_squeeze %189 : memref<1x1x128xf32, #tpu.memory_space<vmem>> -> memref<1x128xf32, #tpu.memory_space<vmem>>
    %191 = tpu.memref_slice %arg7[%c1_i32_217, %c4_i32_218] : memref<2x8x!tpu.dma_semaphore, #tpu.memory_space<semaphore_mem>> -> memref<1x1x!tpu.dma_semaphore, #tpu.memory_space<semaphore_mem>>
    %192 = tpu.memref_squeeze %191 : memref<1x1x!tpu.dma_semaphore, #tpu.memory_space<semaphore_mem>> -> memref<!tpu.dma_semaphore, #tpu.memory_space<semaphore_mem>>
    tpu.wait_dma2 semaphore(%192 : memref<!tpu.dma_semaphore, #tpu.memory_space<semaphore_mem>>) src(%188 : memref<1x128xf32, #tpu.memory_space<any>>) dst(%190 : memref<1x128xf32, #tpu.memory_space<vmem>>)
    %c1_i32_222 = arith.constant 1 : i32
    %c1_i32_223 = arith.constant 1 : i32
    %c5_i32_224 = arith.constant 5 : i32
    %c0_i32_225 = arith.constant 0 : i32
    %193 = tpu.memref_slice %arg2[%106, %c0_i32_225] : memref<3x128xf32, #tpu.memory_space<any>> -> memref<1x128xf32, #tpu.memory_space<any>>
    %c5_i32_226 = arith.constant 5 : i32
    %c0_i32_227 = arith.constant 0 : i32
    %194 = tpu.memref_slice %arg6[%c1_i32_222, %c5_i32_226, %c0_i32_227] : memref<2x8x128xf32, #tpu.memory_space<vmem>> -> memref<1x1x128xf32, #tpu.memory_space<vmem>>
    %195 = tpu.memref_squeeze %194 : memref<1x1x128xf32, #tpu.memory_space<vmem>> -> memref<1x128xf32, #tpu.memory_space<vmem>>
    %196 = tpu.memref_slice %arg7[%c1_i32_223, %c5_i32_224] : memref<2x8x!tpu.dma_semaphore, #tpu.memory_space<semaphore_mem>> -> memref<1x1x!tpu.dma_semaphore, #tpu.memory_space<semaphore_mem>>
    %197 = tpu.memref_squeeze %196 : memref<1x1x!tpu.dma_semaphore, #tpu.memory_space<semaphore_mem>> -> memref<!tpu.dma_semaphore, #tpu.memory_space<semaphore_mem>>
    tpu.wait_dma2 semaphore(%197 : memref<!tpu.dma_semaphore, #tpu.memory_space<semaphore_mem>>) src(%193 : memref<1x128xf32, #tpu.memory_space<any>>) dst(%195 : memref<1x128xf32, #tpu.memory_space<vmem>>)
    %c1_i32_228 = arith.constant 1 : i32
    %c1_i32_229 = arith.constant 1 : i32
    %c6_i32_230 = arith.constant 6 : i32
    %c0_i32_231 = arith.constant 0 : i32
    %198 = tpu.memref_slice %arg2[%114, %c0_i32_231] : memref<3x128xf32, #tpu.memory_space<any>> -> memref<1x128xf32, #tpu.memory_space<any>>
    %c6_i32_232 = arith.constant 6 : i32
    %c0_i32_233 = arith.constant 0 : i32
    %199 = tpu.memref_slice %arg6[%c1_i32_228, %c6_i32_232, %c0_i32_233] : memref<2x8x128xf32, #tpu.memory_space<vmem>> -> memref<1x1x128xf32, #tpu.memory_space<vmem>>
    %200 = tpu.memref_squeeze %199 : memref<1x1x128xf32, #tpu.memory_space<vmem>> -> memref<1x128xf32, #tpu.memory_space<vmem>>
    %201 = tpu.memref_slice %arg7[%c1_i32_229, %c6_i32_230] : memref<2x8x!tpu.dma_semaphore, #tpu.memory_space<semaphore_mem>> -> memref<1x1x!tpu.dma_semaphore, #tpu.memory_space<semaphore_mem>>
    %202 = tpu.memref_squeeze %201 : memref<1x1x!tpu.dma_semaphore, #tpu.memory_space<semaphore_mem>> -> memref<!tpu.dma_semaphore, #tpu.memory_space<semaphore_mem>>
    tpu.wait_dma2 semaphore(%202 : memref<!tpu.dma_semaphore, #tpu.memory_space<semaphore_mem>>) src(%198 : memref<1x128xf32, #tpu.memory_space<any>>) dst(%200 : memref<1x128xf32, #tpu.memory_space<vmem>>)
    %c1_i32_234 = arith.constant 1 : i32
    %c1_i32_235 = arith.constant 1 : i32
    %c7_i32_236 = arith.constant 7 : i32
    %c0_i32_237 = arith.constant 0 : i32
    %203 = tpu.memref_slice %arg2[%122, %c0_i32_237] : memref<3x128xf32, #tpu.memory_space<any>> -> memref<1x128xf32, #tpu.memory_space<any>>
    %c7_i32_238 = arith.constant 7 : i32
    %c0_i32_239 = arith.constant 0 : i32
    %204 = tpu.memref_slice %arg6[%c1_i32_234, %c7_i32_238, %c0_i32_239] : memref<2x8x128xf32, #tpu.memory_space<vmem>> -> memref<1x1x128xf32, #tpu.memory_space<vmem>>
    %205 = tpu.memref_squeeze %204 : memref<1x1x128xf32, #tpu.memory_space<vmem>> -> memref<1x128xf32, #tpu.memory_space<vmem>>
    %206 = tpu.memref_slice %arg7[%c1_i32_235, %c7_i32_236] : memref<2x8x!tpu.dma_semaphore, #tpu.memory_space<semaphore_mem>> -> memref<1x1x!tpu.dma_semaphore, #tpu.memory_space<semaphore_mem>>
    %207 = tpu.memref_squeeze %206 : memref<1x1x!tpu.dma_semaphore, #tpu.memory_space<semaphore_mem>> -> memref<!tpu.dma_semaphore, #tpu.memory_space<semaphore_mem>>
    tpu.wait_dma2 semaphore(%207 : memref<!tpu.dma_semaphore, #tpu.memory_space<semaphore_mem>>) src(%203 : memref<1x128xf32, #tpu.memory_space<any>>) dst(%205 : memref<1x128xf32, #tpu.memory_space<vmem>>)
    %c0_240 = arith.constant 0 : index
    %c0_241 = arith.constant 0 : index
    %c0_242 = arith.constant 0 : index
    %208 = vector.load %arg6[%c0_240, %c0_241, %c0_242] : memref<2x8x128xf32, #tpu.memory_space<vmem>>, vector<1x8x128xf32>
    %209 = vector.shape_cast %208 : vector<1x8x128xf32> to vector<8x128xf32>
    %c1_243 = arith.constant 1 : index
    %c0_244 = arith.constant 0 : index
    %c0_245 = arith.constant 0 : index
    %210 = vector.load %arg6[%c1_243, %c0_244, %c0_245] : memref<2x8x128xf32, #tpu.memory_space<vmem>>, vector<1x8x128xf32>
    %211 = vector.shape_cast %210 : vector<1x8x128xf32> to vector<8x128xf32>
    %212 = arith.addf %209, %211 : vector<8x128xf32>
    %c0_246 = arith.constant 0 : index
    %c0_247 = arith.constant 0 : index
    %213 = vector.load %arg3[%c0_246, %c0_247] : memref<128x128xf32, #tpu.memory_space<vmem>>, vector<128x128xf32>
    %cst = arith.constant dense<0.000000e+00> : vector<8x128xf32>
    %214 = tpu.matmul %212, %213, %cst {dimension_numbers = #tpu.dot_dimension_numbers<[1], [0], [0], [1], [0, 0, 1, 1], [], []>} : vector<8x128xf32>, vector<128x128xf32>, vector<8x128xf32> -> vector<8x128xf32>
    %c0_248 = arith.constant 0 : index
    %c0_249 = arith.constant 0 : index
    %215 = vector.load %arg4[%c0_248, %c0_249] : memref<1x128xf32, #tpu.memory_space<vmem>>, vector<1x128xf32>
    %216 = vector.broadcast %215 : vector<1x128xf32> to vector<8x128xf32>
    %217 = arith.addf %214, %216 : vector<8x128xf32>
    %cst_250 = arith.constant 0.000000e+00 : f32
    %218 = vector.broadcast %cst_250 : f32 to vector<8x128xf32>
    %219 = arith.maximumf %217, %218 : vector<8x128xf32>
    %c0_251 = arith.constant 0 : index
    %c0_252 = arith.constant 0 : index
    %220 = vector.load %arg5[%c0_251, %c0_252] : memref<8x128xf32, #tpu.memory_space<vmem>>, vector<8x128xf32>
    tpu.vector_store %arg5[%c0_251, %c0_252], %219 {strides = array<i32>} : memref<8x128xf32, #tpu.memory_space<vmem>>, vector<8x128xf32>,
    return
  }
  func.func @transform_1(%arg0: i32, %arg1: memref<8x2xi32, #tpu.memory_space<smem>>) -> (i32, i32) {
    %c0_i32 = arith.constant 0 : i32
    %c0_i32_0 = arith.constant 0 : i32
    %c0_i32_1 = arith.constant 0 : i32
    return %c0_i32, %c0_i32_0 : i32, i32
  }
  func.func @transform_2(%arg0: i32, %arg1: memref<8x2xi32, #tpu.memory_space<smem>>) -> (i32, i32) {
    %c0_i32 = arith.constant 0 : i32
    %c0_i32_0 = arith.constant 0 : i32
    %c0_i32_1 = arith.constant 0 : i32
    return %c0_i32, %c0_i32_0 : i32, i32
  }
  func.func @transform_3(%arg0: i32, %arg1: memref<8x2xi32, #tpu.memory_space<smem>>) -> (i32, i32) {
    %c0_i32 = arith.constant 0 : i32
    %c0_i32_0 = arith.constant 0 : i32
    %c0_i32_1 = arith.constant 0 : i32
    return %c0_i32, %c0_i32_0 : i32, i32
  }
}

</mosaic_0001>

<llo_original>
// kernel: tpu_custom_call.1
$region0: #{tpu_custom_call.1}
  #allocation0 [shape = 'u32[]', space=smem, size = 0x4, offset = 0x4, fixed_abs, tag = 'smem constant byte address 0x4 - core index']
  #allocation1 [shape = 'u32[144,128]{1,0:T(1,128)}', space=vmem, size = 0x12000, scoped, tag = 'internal scratch']
  #allocation2 [shape = 'f32[2,8,128]{2,1,0:T(8,128)}', space=vmem, size = 0x2000, scoped, tag = 'scratch operand']
  #allocation3 [shape = 's32[16]{0}', space=sflag, size = 0x40, scoped, tag = 'scratch operand']
  #allocation4 [shape = 's32[1]{0}', space=sflag, size = 0x4, scoped, tag = 'scoped memory for tpu_custom_call.1']
  #allocation5 [shape = 'u8[4096]{0}', space=smem, size = 0x1000, scoped, tag = 'prefetched SMEM operand 0']
  #allocation10 [shape = 's32[]', space=sflag, size = 0x4, offset = 0, fixed_abs, tag = 'sflag constant byte address 0x0 - dummy sync flag']
  #allocation11 [shape = 's32[]', space=sflag, size = 0x4, offset = 0, fixed_abs, tag = 'sflag constant byte address 0x0 - dummy sync flag']
  #allocation12 [shape = 's32[]', space=sflag, size = 0x4, offset = 0, fixed_abs, tag = 'sflag constant byte address 0x0 - dummy sync flag']
  #allocation13 [shape = 's32[]', space=sflag, size = 0x4, offset = 0, fixed_abs, tag = 'sflag constant byte address 0x0 - dummy sync flag']
  #allocation14 [shape = 's32[]', space=sflag, size = 0x4, offset = 0, fixed_abs, tag = 'sflag constant byte address 0x0 - dummy sync flag']
  #allocation15 [shape = 's32[]', space=sflag, size = 0x4, offset = 0, fixed_abs, tag = 'sflag constant byte address 0x0 - dummy sync flag']
  #allocation16 [shape = 's32[]', space=sflag, size = 0x4, offset = 0, fixed_abs, tag = 'sflag constant byte address 0x0 - dummy sync flag']
  #allocation17 [shape = 's32[]', space=sflag, size = 0x4, offset = 0, fixed_abs, tag = 'sflag constant byte address 0x0 - dummy sync flag']
  #allocation18 [shape = 's32[]', space=sflag, size = 0x4, offset = 0, fixed_abs, tag = 'sflag constant byte address 0x0 - dummy sync flag']
  #allocation19 [shape = 's32[]', space=sflag, size = 0x4, offset = 0, fixed_abs, tag = 'sflag constant byte address 0x0 - dummy sync flag']
  #allocation20 [shape = 's32[]', space=sflag, size = 0x4, offset = 0, fixed_abs, tag = 'sflag constant byte address 0x0 - dummy sync flag']
  #allocation21 [shape = 's32[]', space=sflag, size = 0x4, offset = 0, fixed_abs, tag = 'sflag constant byte address 0x0 - dummy sync flag']
  #allocation22 [shape = 's32[]', space=sflag, size = 0x4, offset = 0, fixed_abs, tag = 'sflag constant byte address 0x0 - dummy sync flag']
  #allocation23 [shape = 's32[]', space=sflag, size = 0x4, offset = 0, fixed_abs, tag = 'sflag constant byte address 0x0 - dummy sync flag']
  #allocation24 [shape = 's32[]', space=sflag, size = 0x4, offset = 0, fixed_abs, tag = 'sflag constant byte address 0x0 - dummy sync flag']
  #allocation25 [shape = 's32[]', space=sflag, size = 0x4, offset = 0, fixed_abs, tag = 'sflag constant byte address 0x0 - dummy sync flag']
  %s0 = inlined_call_operand.vmem [shape: s32[8,2], index: 0, kind: input, shape index: {}]
  %s1 = inlined_call_operand.vmem [shape: f32[3,128], index: 1, kind: input, shape index: {}]
  %s2 = inlined_call_operand.hbm [shape: f32[128,128], index: 2, kind: input, shape index: {}]
  %s3 = inlined_call_operand.vmem [shape: f32[1,128], index: 3, kind: input, shape index: {}]
  %s4 = inlined_call_operand.hbm [shape: f32[8,128], index: 4, kind: output, shape index: {}]
  %s5 = sld [smem:[#allocation0]]
  $region502: #{tpu_custom_call.1} parent=0
    _
  %s7 = ssub.s32 1, %s5
  %s8 = scalar_select 0, %s7, %s5
  %s9 = sshll.u32 %s0, 4
  %s10 = int_to_ptr.vmem [resolvable:$true] %s9
  %12 = dma.vmem_to_smem %s10, 128, [#allocation5], [#allocation4]
  %13 = dma.done [#allocation4], 128
  %14 = sfence
  $region1: #{tpu_custom_call.1} parent=0
    #allocation6 [shape = 'u8[65536]{0}', space=vmem, size = 0x10000, scoped, tag = 'input window, operand 2, single buffered']
    #allocation7 [shape = 's32[1]{0}', space=sflag, size = 0x4, scoped, tag = 'scoped memory for tpu_custom_call.1']
    #allocation8 [shape = 's32[1]{0}', space=sflag, size = 0x4, scoped, tag = 'scoped memory for tpu_custom_call.1']
    #allocation9 [shape = 'u8[4096]{0}', space=vmem, size = 0x1000, scoped, tag = 'output window, operand 0, single buffered']
    %15 = vsyncpa [#allocation7], 0
    %16 = vsyncpa [#allocation8], 0
    // Predicated region
    $region2: #{tpu_custom_call.1} parent=1 // pred_check
      _
    $region3: #{tpu_custom_call.1} parent=1 // pred_check_branch
      %18 = sbr.rel (0) target = $region5
    $region4: #{tpu_custom_call.1} parent=1 // pred_region
      %s20 = ssub.s32 2048, 2048
      %21 = vsyncadd [#allocation7], %s20
      %s22 = sshll.u32 [#allocation6], 4
      %s23 = int_to_ptr.vmem [resolvable:$true] %s22
      %28 = dma.hbm_to_vmem [thread:$0]  %s2, 2048, %s23, [#allocation7], 128, 128, 8
    $region5: #{tpu_custom_call.1} parent=1 // pred_fallthru
      _
    // Predicated region
    $region6: #{tpu_custom_call.1} parent=1 // pred_check
      _
    $region7: #{tpu_custom_call.1} parent=1 // pred_check_branch
      %30 = sbr.rel (0) target = $region9
    $region8: #{tpu_custom_call.1} parent=1 // pred_region
      _
    $region9: #{tpu_custom_call.1} parent=1 // pred_fallthru
      _
    // Predicated region
    $region10: #{tpu_custom_call.1} parent=1 // pred_check
      _
    $region11: #{tpu_custom_call.1} parent=1 // pred_check_branch
      %32 = sbr.rel (0) target = $region13
    $region12: #{tpu_custom_call.1} parent=1 // pred_region
      %33 = dma.done [#allocation7], 2048
    $region13: #{tpu_custom_call.1} parent=1 // pred_fallthru
      _
    %s34 = sld [smem:[#allocation5]]
    %p35 = scmp.gt.s32.totalorder %s34, 0
    %s36 = scalar_select %p35, %s34, 0
    %p37 = scmp.lt.s32.totalorder %s36, 2
    %s38 = scalar_select %p37, %s36, 2
    %s39 = scalar_lea.vmem %s1, %s38
    %p41 = scmp.lt.u32.totalorder 1, 8
    %p42 = pneg %p41
    // Predicated region
    $region14: #{tpu_custom_call.1} parent=1 // pred_check
      _
    $region15: #{tpu_custom_call.1} parent=1 // pred_check_branch
      %44 = sbr.rel (%p41) target = $region17
    $region16: #{tpu_custom_call.1} parent=1 // pred_region
      %s59 = sand.u32 1, 7
      %p60 = scmp.eq.s32.totalorder %s59, 0
      %p61 = pneg %p60
      // Predicated region
      $region29: #{tpu_custom_call.1} parent=16 // pred_check
        _
      $region30: #{tpu_custom_call.1} parent=16 // pred_check_branch
        %63 = sbr.rel (%p60) target = $region32
      $region31: #{tpu_custom_call.1} parent=16 // pred_region
        %s64 = sand.u32 1, 7
        %s65 = ssub.s32 1, %s64
        %s66 = scalar_lea.vmem %s39, %s65
        %s67 = ssub.s32 1, %s64
        %s68 = scalar_lea.vmem [#allocation2], %s67
        %s69 = sshllo.u32 0, %s64
        loop: start=0, step=1, limit=1
        $region33: #{tpu_custom_call.1} parent=31 // loop_pre_header
          _
        $region34: #{tpu_custom_call.1} parent=31 // loop_header
          %s71 = sphi 0, %s75
          %p72 = scmp.ge.s32.totalorder %s71, 1
          %s76 = sphi %s66, %s66
          %s77 = sphi %s68, %s68
        $region35: #{tpu_custom_call.1} parent=31 // loop_header_branch
          %74 = sbr.rel (%p72) target = $region39
        $region36: #{tpu_custom_call.1} parent=31 // loop_body
          %v78 = vld [vmem:[%s76] sm:%s69]
          %79 = vst [vmem:[%s77] sm:%s69] %v78
        $region37: #{tpu_custom_call.1} parent=31 // loop_footer
          %s75 = sadd.s32 1, %s71
        $region38: #{tpu_custom_call.1} parent=31 // loop_footer_branch
          %70 = sbr.rel target = $region34
        $region39: #{tpu_custom_call.1} parent=31 // loop_exit
          _
      $region32: #{tpu_custom_call.1} parent=16 // pred_fallthru
        _
    $region17: #{tpu_custom_call.1} parent=1 // pred_fallthru
      _
    // Predicated region
    $region18: #{tpu_custom_call.1} parent=1 // pred_check
      %p45 = pneg %p41
    $region19: #{tpu_custom_call.1} parent=1 // pred_check_branch
      %47 = sbr.rel (%p45) target = $region21
    $region20: #{tpu_custom_call.1} parent=1 // pred_region
      %s48 = sshllo.u32 0, 1
      loop: start=0, step=1, limit=1
      $region22: #{tpu_custom_call.1} parent=20 // loop_pre_header
        _
      $region23: #{tpu_custom_call.1} parent=20 // loop_header
        %s50 = sphi 0, %s54
        %p51 = scmp.ge.s32.totalorder %s50, 1
        %s55 = sphi %s39, %s39
        %s56 = sphi [#allocation2], [#allocation2]
      $region24: #{tpu_custom_call.1} parent=20 // loop_header_branch
        %53 = sbr.rel (%p51) target = $region28
      $region25: #{tpu_custom_call.1} parent=20 // loop_body
        %v57 = vld [vmem:[%s55] sm:%s48]
        %58 = vst [vmem:[%s56] sm:%s48] %v57
      $region26: #{tpu_custom_call.1} parent=20 // loop_footer
        %s54 = sadd.s32 1, %s50
      $region27: #{tpu_custom_call.1} parent=20 // loop_footer_branch
        %49 = sbr.rel target = $region23
      $region28: #{tpu_custom_call.1} parent=20 // loop_exit
        _
    $region21: #{tpu_custom_call.1} parent=1 // pred_fallthru
      _
    // Predicated region
    $region40: #{tpu_custom_call.1} parent=1 // pred_check
      _
    $region41: #{tpu_custom_call.1} parent=1 // pred_check_branch
      %82 = sbr.rel (0) target = $region43
    $region42: #{tpu_custom_call.1} parent=1 // pred_region
      %83 = vsyncadd [#allocation3], 16
    $region43: #{tpu_custom_call.1} parent=1 // pred_fallthru
      _
    %s84 = sld [smem:[#allocation5 + $0x80]]
    %p85 = scmp.gt.s32.totalorder %s84, 0
    %s86 = scalar_select %p85, %s84, 0
    %p87 = scmp.lt.s32.totalorder %s86, 2
    %s88 = scalar_select %p87, %s86, 2
    %s89 = scalar_lea.vmem %s1, %s88
    %s90 = scalar_lea.vmem [#allocation2], 1
    %s91 = scalar_lea.sflag [#allocation3], 1
    %p93 = scmp.lt.u32.totalorder 1, 8
    %p94 = pneg %p93
    // Predicated region
    $region44: #{tpu_custom_call.1} parent=1 // pred_check
      _
    $region45: #{tpu_custom_call.1} parent=1 // pred_check_branch
      %96 = sbr.rel (%p93) target = $region47
    $region46: #{tpu_custom_call.1} parent=1 // pred_region
      %s111 = sand.u32 1, 7
      %p112 = scmp.eq.s32.totalorder %s111, 0
      %p113 = pneg %p112
      // Predicated region
      $region59: #{tpu_custom_call.1} parent=46 // pred_check
        _
      $region60: #{tpu_custom_call.1} parent=46 // pred_check_branch
        %115 = sbr.rel (%p112) target = $region62
      $region61: #{tpu_custom_call.1} parent=46 // pred_region
        %s116 = sand.u32 1, 7
        %s117 = ssub.s32 1, %s116
        %s118 = scalar_lea.vmem %s89, %s117
        %s119 = ssub.s32 1, %s116
        %s120 = scalar_lea.vmem %s90, %s119 [#allocation2]
        %s121 = sshllo.u32 0, %s116
        loop: start=0, step=1, limit=1
        $region63: #{tpu_custom_call.1} parent=61 // loop_pre_header
          _
        $region64: #{tpu_custom_call.1} parent=61 // loop_header
          %s123 = sphi 0, %s127
          %p124 = scmp.ge.s32.totalorder %s123, 1
          %s128 = sphi %s118, %s118
          %s129 = sphi %s120, %s120
        $region65: #{tpu_custom_call.1} parent=61 // loop_header_branch
          %126 = sbr.rel (%p124) target = $region69
        $region66: #{tpu_custom_call.1} parent=61 // loop_body
          %v130 = vld [vmem:[%s128] sm:%s121]
          %131 = vst [vmem:[%s129] sm:%s121] %v130
        $region67: #{tpu_custom_call.1} parent=61 // loop_footer
          %s127 = sadd.s32 1, %s123
        $region68: #{tpu_custom_call.1} parent=61 // loop_footer_branch
          %122 = sbr.rel target = $region64
        $region69: #{tpu_custom_call.1} parent=61 // loop_exit
          _
      $region62: #{tpu_custom_call.1} parent=46 // pred_fallthru
        _
    $region47: #{tpu_custom_call.1} parent=1 // pred_fallthru
      _
    // Predicated region
    $region48: #{tpu_custom_call.1} parent=1 // pred_check
      %p97 = pneg %p93
    $region49: #{tpu_custom_call.1} parent=1 // pred_check_branch
      %99 = sbr.rel (%p97) target = $region51
    $region50: #{tpu_custom_call.1} parent=1 // pred_region
      %s100 = sshllo.u32 0, 1
      loop: start=0, step=1, limit=1
      $region52: #{tpu_custom_call.1} parent=50 // loop_pre_header
        _
      $region53: #{tpu_custom_call.1} parent=50 // loop_header
        %s102 = sphi 0, %s106
        %p103 = scmp.ge.s32.totalorder %s102, 1
        %s107 = sphi %s89, %s89
        %s108 = sphi %s90, %s90
      $region54: #{tpu_custom_call.1} parent=50 // loop_header_branch
        %105 = sbr.rel (%p103) target = $region58
      $region55: #{tpu_custom_call.1} parent=50 // loop_body
        %v109 = vld [vmem:[%s107] sm:%s100]
        %110 = vst [vmem:[%s108] sm:%s100] %v109
      $region56: #{tpu_custom_call.1} parent=50 // loop_footer
        %s106 = sadd.s32 1, %s102
      $region57: #{tpu_custom_call.1} parent=50 // loop_footer_branch
        %101 = sbr.rel target = $region53
      $region58: #{tpu_custom_call.1} parent=50 // loop_exit
        _
    $region51: #{tpu_custom_call.1} parent=1 // pred_fallthru
      _
    // Predicated region
    $region70: #{tpu_custom_call.1} parent=1 // pred_check
      _
    $region71: #{tpu_custom_call.1} parent=1 // pred_check_branch
      %134 = sbr.rel (0) target = $region73
    $region72: #{tpu_custom_call.1} parent=1 // pred_region
      %135 = vsyncadd %s91, 16
    $region73: #{tpu_custom_call.1} parent=1 // pred_fallthru
      _
    %s136 = sld [smem:[#allocation5 + $0x100]]
    %p137 = scmp.gt.s32.totalorder %s136, 0
    %s138 = scalar_select %p137, %s136, 0
    %p139 = scmp.lt.s32.totalorder %s138, 2
    %s140 = scalar_select %p139, %s138, 2
    %s141 = scalar_lea.vmem %s1, %s140
    %s142 = scalar_lea.vmem [#allocation2], 2
    %s143 = scalar_lea.sflag [#allocation3], 2
    %p145 = scmp.lt.u32.totalorder 1, 8
    %p146 = pneg %p145
    // Predicated region
    $region74: #{tpu_custom_call.1} parent=1 // pred_check
      _
    $region75: #{tpu_custom_call.1} parent=1 // pred_check_branch
      %148 = sbr.rel (%p145) target = $region77
    $region76: #{tpu_custom_call.1} parent=1 // pred_region
      %s163 = sand.u32 1, 7
      %p164 = scmp.eq.s32.totalorder %s163, 0
      %p165 = pneg %p164
      // Predicated region
      $region89: #{tpu_custom_call.1} parent=76 // pred_check
        _
      $region90: #{tpu_custom_call.1} parent=76 // pred_check_branch
        %167 = sbr.rel (%p164) target = $region92
      $region91: #{tpu_custom_call.1} parent=76 // pred_region
        %s168 = sand.u32 1, 7
        %s169 = ssub.s32 1, %s168
        %s170 = scalar_lea.vmem %s141, %s169
        %s171 = ssub.s32 1, %s168
        %s172 = scalar_lea.vmem %s142, %s171 [#allocation2]
        %s173 = sshllo.u32 0, %s168
        loop: start=0, step=1, limit=1
        $region93: #{tpu_custom_call.1} parent=91 // loop_pre_header
          _
        $region94: #{tpu_custom_call.1} parent=91 // loop_header
          %s175 = sphi 0, %s179
          %p176 = scmp.ge.s32.totalorder %s175, 1
          %s180 = sphi %s170, %s170
          %s181 = sphi %s172, %s172
        $region95: #{tpu_custom_call.1} parent=91 // loop_header_branch
          %178 = sbr.rel (%p176) target = $region99
        $region96: #{tpu_custom_call.1} parent=91 // loop_body
          %v182 = vld [vmem:[%s180] sm:%s173]
          %183 = vst [vmem:[%s181] sm:%s173] %v182
        $region97: #{tpu_custom_call.1} parent=91 // loop_footer
          %s179 = sadd.s32 1, %s175
        $region98: #{tpu_custom_call.1} parent=91 // loop_footer_branch
          %174 = sbr.rel target = $region94
        $region99: #{tpu_custom_call.1} parent=91 // loop_exit
          _
      $region92: #{tpu_custom_call.1} parent=76 // pred_fallthru
        _
    $region77: #{tpu_custom_call.1} parent=1 // pred_fallthru
      _
    // Predicated region
    $region78: #{tpu_custom_call.1} parent=1 // pred_check
      %p149 = pneg %p145
    $region79: #{tpu_custom_call.1} parent=1 // pred_check_branch
      %151 = sbr.rel (%p149) target = $region81
    $region80: #{tpu_custom_call.1} parent=1 // pred_region
      %s152 = sshllo.u32 0, 1
      loop: start=0, step=1, limit=1
      $region82: #{tpu_custom_call.1} parent=80 // loop_pre_header
        _
      $region83: #{tpu_custom_call.1} parent=80 // loop_header
        %s154 = sphi 0, %s158
        %p155 = scmp.ge.s32.totalorder %s154, 1
        %s159 = sphi %s141, %s141
        %s160 = sphi %s142, %s142
      $region84: #{tpu_custom_call.1} parent=80 // loop_header_branch
        %157 = sbr.rel (%p155) target = $region88
      $region85: #{tpu_custom_call.1} parent=80 // loop_body
        %v161 = vld [vmem:[%s159] sm:%s152]
        %162 = vst [vmem:[%s160] sm:%s152] %v161
      $region86: #{tpu_custom_call.1} parent=80 // loop_footer
        %s158 = sadd.s32 1, %s154
      $region87: #{tpu_custom_call.1} parent=80 // loop_footer_branch
        %153 = sbr.rel target = $region83
      $region88: #{tpu_custom_call.1} parent=80 // loop_exit
        _
    $region81: #{tpu_custom_call.1} parent=1 // pred_fallthru
      _
    // Predicated region
    $region100: #{tpu_custom_call.1} parent=1 // pred_check
      _
    $region101: #{tpu_custom_call.1} parent=1 // pred_check_branch
      %186 = sbr.rel (0) target = $region103
    $region102: #{tpu_custom_call.1} parent=1 // pred_region
      %187 = vsyncadd %s143, 16
    $region103: #{tpu_custom_call.1} parent=1 // pred_fallthru
      _
    %s188 = sld [smem:[#allocation5 + $0x180]]
    %p189 = scmp.gt.s32.totalorder %s188, 0
    %s190 = scalar_select %p189, %s188, 0
    %p191 = scmp.lt.s32.totalorder %s190, 2
    %s192 = scalar_select %p191, %s190, 2
    %s193 = scalar_lea.vmem %s1, %s192
    %s194 = scalar_lea.vmem [#allocation2], 3
    %s195 = scalar_lea.sflag [#allocation3], 3
    %p197 = scmp.lt.u32.totalorder 1, 8
    %p198 = pneg %p197
    // Predicated region
    $region104: #{tpu_custom_call.1} parent=1 // pred_check
      _
    $region105: #{tpu_custom_call.1} parent=1 // pred_check_branch
      %200 = sbr.rel (%p197) target = $region107
    $region106: #{tpu_custom_call.1} parent=1 // pred_region
      %s215 = sand.u32 1, 7
      %p216 = scmp.eq.s32.totalorder %s215, 0
      %p217 = pneg %p216
      // Predicated region
      $region119: #{tpu_custom_call.1} parent=106 // pred_check
        _
      $region120: #{tpu_custom_call.1} parent=106 // pred_check_branch
        %219 = sbr.rel (%p216) target = $region122
      $region121: #{tpu_custom_call.1} parent=106 // pred_region
        %s220 = sand.u32 1, 7
        %s221 = ssub.s32 1, %s220
        %s222 = scalar_lea.vmem %s193, %s221
        %s223 = ssub.s32 1, %s220
        %s224 = scalar_lea.vmem %s194, %s223 [#allocation2]
        %s225 = sshllo.u32 0, %s220
        loop: start=0, step=1, limit=1
        $region123: #{tpu_custom_call.1} parent=121 // loop_pre_header
          _
        $region124: #{tpu_custom_call.1} parent=121 // loop_header
          %s227 = sphi 0, %s231
          %p228 = scmp.ge.s32.totalorder %s227, 1
          %s232 = sphi %s222, %s222
          %s233 = sphi %s224, %s224
        $region125: #{tpu_custom_call.1} parent=121 // loop_header_branch
          %230 = sbr.rel (%p228) target = $region129
        $region126: #{tpu_custom_call.1} parent=121 // loop_body
          %v234 = vld [vmem:[%s232] sm:%s225]
          %235 = vst [vmem:[%s233] sm:%s225] %v234
        $region127: #{tpu_custom_call.1} parent=121 // loop_footer
          %s231 = sadd.s32 1, %s227
        $region128: #{tpu_custom_call.1} parent=121 // loop_footer_branch
          %226 = sbr.rel target = $region124
        $region129: #{tpu_custom_call.1} parent=121 // loop_exit
          _
      $region122: #{tpu_custom_call.1} parent=106 // pred_fallthru
        _
    $region107: #{tpu_custom_call.1} parent=1 // pred_fallthru
      _
    // Predicated region
    $region108: #{tpu_custom_call.1} parent=1 // pred_check
      %p201 = pneg %p197
    $region109: #{tpu_custom_call.1} parent=1 // pred_check_branch
      %203 = sbr.rel (%p201) target = $region111
    $region110: #{tpu_custom_call.1} parent=1 // pred_region
      %s204 = sshllo.u32 0, 1
      loop: start=0, step=1, limit=1
      $region112: #{tpu_custom_call.1} parent=110 // loop_pre_header
        _
      $region113: #{tpu_custom_call.1} parent=110 // loop_header
        %s206 = sphi 0, %s210
        %p207 = scmp.ge.s32.totalorder %s206, 1
        %s211 = sphi %s193, %s193
        %s212 = sphi %s194, %s194
      $region114: #{tpu_custom_call.1} parent=110 // loop_header_branch
        %209 = sbr.rel (%p207) target = $region118
      $region115: #{tpu_custom_call.1} parent=110 // loop_body
        %v213 = vld [vmem:[%s211] sm:%s204]
        %214 = vst [vmem:[%s212] sm:%s204] %v213
      $region116: #{tpu_custom_call.1} parent=110 // loop_footer
        %s210 = sadd.s32 1, %s206
      $region117: #{tpu_custom_call.1} parent=110 // loop_footer_branch
        %205 = sbr.rel target = $region113
      $region118: #{tpu_custom_call.1} parent=110 // loop_exit
        _
    $region111: #{tpu_custom_call.1} parent=1 // pred_fallthru
      _
    // Predicated region
    $region130: #{tpu_custom_call.1} parent=1 // pred_check
      _
    $region131: #{tpu_custom_call.1} parent=1 // pred_check_branch
      %238 = sbr.rel (0) target = $region133
    $region132: #{tpu_custom_call.1} parent=1 // pred_region
      %239 = vsyncadd %s195, 16
    $region133: #{tpu_custom_call.1} parent=1 // pred_fallthru
      _
    %s240 = sld [smem:[#allocation5 + $0x200]]
    %p241 = scmp.gt.s32.totalorder %s240, 0
    %s242 = scalar_select %p241, %s240, 0
    %p243 = scmp.lt.s32.totalorder %s242, 2
    %s244 = scalar_select %p243, %s242, 2
    %s245 = scalar_lea.vmem %s1, %s244
    %s246 = scalar_lea.vmem [#allocation2], 4
    %s247 = scalar_lea.sflag [#allocation3], 4
    %p249 = scmp.lt.u32.totalorder 1, 8
    %p250 = pneg %p249
    // Predicated region
    $region134: #{tpu_custom_call.1} parent=1 // pred_check
      _
    $region135: #{tpu_custom_call.1} parent=1 // pred_check_branch
      %252 = sbr.rel (%p249) target = $region137
    $region136: #{tpu_custom_call.1} parent=1 // pred_region
      %s267 = sand.u32 1, 7
      %p268 = scmp.eq.s32.totalorder %s267, 0
      %p269 = pneg %p268
      // Predicated region
      $region149: #{tpu_custom_call.1} parent=136 // pred_check
        _
      $region150: #{tpu_custom_call.1} parent=136 // pred_check_branch
        %271 = sbr.rel (%p268) target = $region152
      $region151: #{tpu_custom_call.1} parent=136 // pred_region
        %s272 = sand.u32 1, 7
        %s273 = ssub.s32 1, %s272
        %s274 = scalar_lea.vmem %s245, %s273
        %s275 = ssub.s32 1, %s272
        %s276 = scalar_lea.vmem %s246, %s275 [#allocation2]
        %s277 = sshllo.u32 0, %s272
        loop: start=0, step=1, limit=1
        $region153: #{tpu_custom_call.1} parent=151 // loop_pre_header
          _
        $region154: #{tpu_custom_call.1} parent=151 // loop_header
          %s279 = sphi 0, %s283
          %p280 = scmp.ge.s32.totalorder %s279, 1
          %s284 = sphi %s274, %s274
          %s285 = sphi %s276, %s276
        $region155: #{tpu_custom_call.1} parent=151 // loop_header_branch
          %282 = sbr.rel (%p280) target = $region159
        $region156: #{tpu_custom_call.1} parent=151 // loop_body
          %v286 = vld [vmem:[%s284] sm:%s277]
          %287 = vst [vmem:[%s285] sm:%s277] %v286
        $region157: #{tpu_custom_call.1} parent=151 // loop_footer
          %s283 = sadd.s32 1, %s279
        $region158: #{tpu_custom_call.1} parent=151 // loop_footer_branch
          %278 = sbr.rel target = $region154
        $region159: #{tpu_custom_call.1} parent=151 // loop_exit
          _
      $region152: #{tpu_custom_call.1} parent=136 // pred_fallthru
        _
    $region137: #{tpu_custom_call.1} parent=1 // pred_fallthru
      _
    // Predicated region
    $region138: #{tpu_custom_call.1} parent=1 // pred_check
      %p253 = pneg %p249
    $region139: #{tpu_custom_call.1} parent=1 // pred_check_branch
      %255 = sbr.rel (%p253) target = $region141
    $region140: #{tpu_custom_call.1} parent=1 // pred_region
      %s256 = sshllo.u32 0, 1
      loop: start=0, step=1, limit=1
      $region142: #{tpu_custom_call.1} parent=140 // loop_pre_header
        _
      $region143: #{tpu_custom_call.1} parent=140 // loop_header
        %s258 = sphi 0, %s262
        %p259 = scmp.ge.s32.totalorder %s258, 1
        %s263 = sphi %s245, %s245
        %s264 = sphi %s246, %s246
      $region144: #{tpu_custom_call.1} parent=140 // loop_header_branch
        %261 = sbr.rel (%p259) target = $region148
      $region145: #{tpu_custom_call.1} parent=140 // loop_body
        %v265 = vld [vmem:[%s263] sm:%s256]
        %266 = vst [vmem:[%s264] sm:%s256] %v265
      $region146: #{tpu_custom_call.1} parent=140 // loop_footer
        %s262 = sadd.s32 1, %s258
      $region147: #{tpu_custom_call.1} parent=140 // loop_footer_branch
        %257 = sbr.rel target = $region143
      $region148: #{tpu_custom_call.1} parent=140 // loop_exit
        _
    $region141: #{tpu_custom_call.1} parent=1 // pred_fallthru
      _
    // Predicated region
    $region160: #{tpu_custom_call.1} parent=1 // pred_check
      _
    $region161: #{tpu_custom_call.1} parent=1 // pred_check_branch
      %290 = sbr.rel (0) target = $region163
    $region162: #{tpu_custom_call.1} parent=1 // pred_region
      %291 = vsyncadd %s247, 16
    $region163: #{tpu_custom_call.1} parent=1 // pred_fallthru
      _
    %s292 = sld [smem:[#allocation5 + $0x280]]
    %p293 = scmp.gt.s32.totalorder %s292, 0
    %s294 = scalar_select %p293, %s292, 0
    %p295 = scmp.lt.s32.totalorder %s294, 2
    %s296 = scalar_select %p295, %s294, 2
    %s297 = scalar_lea.vmem %s1, %s296
    %s298 = scalar_lea.vmem [#allocation2], 5
    %s299 = scalar_lea.sflag [#allocation3], 5
    %p301 = scmp.lt.u32.totalorder 1, 8
    %p302 = pneg %p301
    // Predicated region
    $region164: #{tpu_custom_call.1} parent=1 // pred_check
      _
    $region165: #{tpu_custom_call.1} parent=1 // pred_check_branch
      %304 = sbr.rel (%p301) target = $region167
    $region166: #{tpu_custom_call.1} parent=1 // pred_region
      %s319 = sand.u32 1, 7
      %p320 = scmp.eq.s32.totalorder %s319, 0
      %p321 = pneg %p320
      // Predicated region
      $region179: #{tpu_custom_call.1} parent=166 // pred_check
        _
      $region180: #{tpu_custom_call.1} parent=166 // pred_check_branch
        %323 = sbr.rel (%p320) target = $region182
      $region181: #{tpu_custom_call.1} parent=166 // pred_region
        %s324 = sand.u32 1, 7
        %s325 = ssub.s32 1, %s324
        %s326 = scalar_lea.vmem %s297, %s325
        %s327 = ssub.s32 1, %s324
        %s328 = scalar_lea.vmem %s298, %s327 [#allocation2]
        %s329 = sshllo.u32 0, %s324
        loop: start=0, step=1, limit=1
        $region183: #{tpu_custom_call.1} parent=181 // loop_pre_header
          _
        $region184: #{tpu_custom_call.1} parent=181 // loop_header
          %s331 = sphi 0, %s335
          %p332 = scmp.ge.s32.totalorder %s331, 1
          %s336 = sphi %s326, %s326
          %s337 = sphi %s328, %s328
        $region185: #{tpu_custom_call.1} parent=181 // loop_header_branch
          %334 = sbr.rel (%p332) target = $region189
        $region186: #{tpu_custom_call.1} parent=181 // loop_body
          %v338 = vld [vmem:[%s336] sm:%s329]
          %339 = vst [vmem:[%s337] sm:%s329] %v338
        $region187: #{tpu_custom_call.1} parent=181 // loop_footer
          %s335 = sadd.s32 1, %s331
        $region188: #{tpu_custom_call.1} parent=181 // loop_footer_branch
          %330 = sbr.rel target = $region184
        $region189: #{tpu_custom_call.1} parent=181 // loop_exit
          _
      $region182: #{tpu_custom_call.1} parent=166 // pred_fallthru
        _
    $region167: #{tpu_custom_call.1} parent=1 // pred_fallthru
      _
    // Predicated region
    $region168: #{tpu_custom_call.1} parent=1 // pred_check
      %p305 = pneg %p301
    $region169: #{tpu_custom_call.1} parent=1 // pred_check_branch
      %307 = sbr.rel (%p305) target = $region171
    $region170: #{tpu_custom_call.1} parent=1 // pred_region
      %s308 = sshllo.u32 0, 1
      loop: start=0, step=1, limit=1
      $region172: #{tpu_custom_call.1} parent=170 // loop_pre_header
        _
      $region173: #{tpu_custom_call.1} parent=170 // loop_header
        %s310 = sphi 0, %s314
        %p311 = scmp.ge.s32.totalorder %s310, 1
        %s315 = sphi %s297, %s297
        %s316 = sphi %s298, %s298
      $region174: #{tpu_custom_call.1} parent=170 // loop_header_branch
        %313 = sbr.rel (%p311) target = $region178
      $region175: #{tpu_custom_call.1} parent=170 // loop_body
        %v317 = vld [vmem:[%s315] sm:%s308]
        %318 = vst [vmem:[%s316] sm:%s308] %v317
      $region176: #{tpu_custom_call.1} parent=170 // loop_footer
        %s314 = sadd.s32 1, %s310
      $region177: #{tpu_custom_call.1} parent=170 // loop_footer_branch
        %309 = sbr.rel target = $region173
      $region178: #{tpu_custom_call.1} parent=170 // loop_exit
        _
    $region171: #{tpu_custom_call.1} parent=1 // pred_fallthru
      _
    // Predicated region
    $region190: #{tpu_custom_call.1} parent=1 // pred_check
      _
    $region191: #{tpu_custom_call.1} parent=1 // pred_check_branch
      %342 = sbr.rel (0) target = $region193
    $region192: #{tpu_custom_call.1} parent=1 // pred_region
      %343 = vsyncadd %s299, 16
    $region193: #{tpu_custom_call.1} parent=1 // pred_fallthru
      _
    %s344 = sld [smem:[#allocation5 + $0x300]]
    %p345 = scmp.gt.s32.totalorder %s344, 0
    %s346 = scalar_select %p345, %s344, 0
    %p347 = scmp.lt.s32.totalorder %s346, 2
    %s348 = scalar_select %p347, %s346, 2
    %s349 = scalar_lea.vmem %s1, %s348
    %s350 = scalar_lea.vmem [#allocation2], 6
    %s351 = scalar_lea.sflag [#allocation3], 6
    %p353 = scmp.lt.u32.totalorder 1, 8
    %p354 = pneg %p353
    // Predicated region
    $region194: #{tpu_custom_call.1} parent=1 // pred_check
      _
    $region195: #{tpu_custom_call.1} parent=1 // pred_check_branch
      %356 = sbr.rel (%p353) target = $region197
    $region196: #{tpu_custom_call.1} parent=1 // pred_region
      %s371 = sand.u32 1, 7
      %p372 = scmp.eq.s32.totalorder %s371, 0
      %p373 = pneg %p372
      // Predicated region
      $region209: #{tpu_custom_call.1} parent=196 // pred_check
        _
      $region210: #{tpu_custom_call.1} parent=196 // pred_check_branch
        %375 = sbr.rel (%p372) target = $region212
      $region211: #{tpu_custom_call.1} parent=196 // pred_region
        %s376 = sand.u32 1, 7
        %s377 = ssub.s32 1, %s376
        %s378 = scalar_lea.vmem %s349, %s377
        %s379 = ssub.s32 1, %s376
        %s380 = scalar_lea.vmem %s350, %s379 [#allocation2]
        %s381 = sshllo.u32 0, %s376
        loop: start=0, step=1, limit=1
        $region213: #{tpu_custom_call.1} parent=211 // loop_pre_header
          _
        $region214: #{tpu_custom_call.1} parent=211 // loop_header
          %s383 = sphi 0, %s387
          %p384 = scmp.ge.s32.totalorder %s383, 1
          %s388 = sphi %s378, %s378
          %s389 = sphi %s380, %s380
        $region215: #{tpu_custom_call.1} parent=211 // loop_header_branch
          %386 = sbr.rel (%p384) target = $region219
        $region216: #{tpu_custom_call.1} parent=211 // loop_body
          %v390 = vld [vmem:[%s388] sm:%s381]
          %391 = vst [vmem:[%s389] sm:%s381] %v390
        $region217: #{tpu_custom_call.1} parent=211 // loop_footer
          %s387 = sadd.s32 1, %s383
        $region218: #{tpu_custom_call.1} parent=211 // loop_footer_branch
          %382 = sbr.rel target = $region214
        $region219: #{tpu_custom_call.1} parent=211 // loop_exit
          _
      $region212: #{tpu_custom_call.1} parent=196 // pred_fallthru
        _
    $region197: #{tpu_custom_call.1} parent=1 // pred_fallthru
      _
    // Predicated region
    $region198: #{tpu_custom_call.1} parent=1 // pred_check
      %p357 = pneg %p353
    $region199: #{tpu_custom_call.1} parent=1 // pred_check_branch
      %359 = sbr.rel (%p357) target = $region201
    $region200: #{tpu_custom_call.1} parent=1 // pred_region
      %s360 = sshllo.u32 0, 1
      loop: start=0, step=1, limit=1
      $region202: #{tpu_custom_call.1} parent=200 // loop_pre_header
        _
      $region203: #{tpu_custom_call.1} parent=200 // loop_header
        %s362 = sphi 0, %s366
        %p363 = scmp.ge.s32.totalorder %s362, 1
        %s367 = sphi %s349, %s349
        %s368 = sphi %s350, %s350
      $region204: #{tpu_custom_call.1} parent=200 // loop_header_branch
        %365 = sbr.rel (%p363) target = $region208
      $region205: #{tpu_custom_call.1} parent=200 // loop_body
        %v369 = vld [vmem:[%s367] sm:%s360]
        %370 = vst [vmem:[%s368] sm:%s360] %v369
      $region206: #{tpu_custom_call.1} parent=200 // loop_footer
        %s366 = sadd.s32 1, %s362
      $region207: #{tpu_custom_call.1} parent=200 // loop_footer_branch
        %361 = sbr.rel target = $region203
      $region208: #{tpu_custom_call.1} parent=200 // loop_exit
        _
    $region201: #{tpu_custom_call.1} parent=1 // pred_fallthru
      _
    // Predicated region
    $region220: #{tpu_custom_call.1} parent=1 // pred_check
      _
    $region221: #{tpu_custom_call.1} parent=1 // pred_check_branch
      %394 = sbr.rel (0) target = $region223
    $region222: #{tpu_custom_call.1} parent=1 // pred_region
      %395 = vsyncadd %s351, 16
    $region223: #{tpu_custom_call.1} parent=1 // pred_fallthru
      _
    %s396 = sld [smem:[#allocation5 + $0x380]]
    %p397 = scmp.gt.s32.totalorder %s396, 0
    %s398 = scalar_select %p397, %s396, 0
    %p399 = scmp.lt.s32.totalorder %s398, 2
    %s400 = scalar_select %p399, %s398, 2
    %s401 = scalar_lea.vmem %s1, %s400
    %s402 = scalar_lea.vmem [#allocation2], 7
    %s403 = scalar_lea.sflag [#allocation3], 7
    %p405 = scmp.lt.u32.totalorder 1, 8
    %p406 = pneg %p405
    // Predicated region
    $region224: #{tpu_custom_call.1} parent=1 // pred_check
      _
    $region225: #{tpu_custom_call.1} parent=1 // pred_check_branch
      %408 = sbr.rel (%p405) target = $region227
    $region226: #{tpu_custom_call.1} parent=1 // pred_region
      %s423 = sand.u32 1, 7
      %p424 = scmp.eq.s32.totalorder %s423, 0
      %p425 = pneg %p424
      // Predicated region
      $region239: #{tpu_custom_call.1} parent=226 // pred_check
        _
      $region240: #{tpu_custom_call.1} parent=226 // pred_check_branch
        %427 = sbr.rel (%p424) target = $region242
      $region241: #{tpu_custom_call.1} parent=226 // pred_region
        %s428 = sand.u32 1, 7
        %s429 = ssub.s32 1, %s428
        %s430 = scalar_lea.vmem %s401, %s429
        %s431 = ssub.s32 1, %s428
        %s432 = scalar_lea.vmem %s402, %s431 [#allocation2]
        %s433 = sshllo.u32 0, %s428
        loop: start=0, step=1, limit=1
        $region243: #{tpu_custom_call.1} parent=241 // loop_pre_header
          _
        $region244: #{tpu_custom_call.1} parent=241 // loop_header
          %s435 = sphi 0, %s439
          %p436 = scmp.ge.s32.totalorder %s435, 1
          %s440 = sphi %s430, %s430
          %s441 = sphi %s432, %s432
        $region245: #{tpu_custom_call.1} parent=241 // loop_header_branch
          %438 = sbr.rel (%p436) target = $region249
        $region246: #{tpu_custom_call.1} parent=241 // loop_body
          %v442 = vld [vmem:[%s440] sm:%s433]
          %443 = vst [vmem:[%s441] sm:%s433] %v442
        $region247: #{tpu_custom_call.1} parent=241 // loop_footer
          %s439 = sadd.s32 1, %s435
        $region248: #{tpu_custom_call.1} parent=241 // loop_footer_branch
          %434 = sbr.rel target = $region244
        $region249: #{tpu_custom_call.1} parent=241 // loop_exit
          _
      $region242: #{tpu_custom_call.1} parent=226 // pred_fallthru
        _
    $region227: #{tpu_custom_call.1} parent=1 // pred_fallthru
      _
    // Predicated region
    $region228: #{tpu_custom_call.1} parent=1 // pred_check
      %p409 = pneg %p405
    $region229: #{tpu_custom_call.1} parent=1 // pred_check_branch
      %411 = sbr.rel (%p409) target = $region231
    $region230: #{tpu_custom_call.1} parent=1 // pred_region
      %s412 = sshllo.u32 0, 1
      loop: start=0, step=1, limit=1
      $region232: #{tpu_custom_call.1} parent=230 // loop_pre_header
        _
      $region233: #{tpu_custom_call.1} parent=230 // loop_header
        %s414 = sphi 0, %s418
        %p415 = scmp.ge.s32.totalorder %s414, 1
        %s419 = sphi %s401, %s401
        %s420 = sphi %s402, %s402
      $region234: #{tpu_custom_call.1} parent=230 // loop_header_branch
        %417 = sbr.rel (%p415) target = $region238
      $region235: #{tpu_custom_call.1} parent=230 // loop_body
        %v421 = vld [vmem:[%s419] sm:%s412]
        %422 = vst [vmem:[%s420] sm:%s412] %v421
      $region236: #{tpu_custom_call.1} parent=230 // loop_footer
        %s418 = sadd.s32 1, %s414
      $region237: #{tpu_custom_call.1} parent=230 // loop_footer_branch
        %413 = sbr.rel target = $region233
      $region238: #{tpu_custom_call.1} parent=230 // loop_exit
        _
    $region231: #{tpu_custom_call.1} parent=1 // pred_fallthru
      _
    // Predicated region
    $region250: #{tpu_custom_call.1} parent=1 // pred_check
      _
    $region251: #{tpu_custom_call.1} parent=1 // pred_check_branch
      %446 = sbr.rel (0) target = $region253
    $region252: #{tpu_custom_call.1} parent=1 // pred_region
      %447 = vsyncadd %s403, 16
    $region253: #{tpu_custom_call.1} parent=1 // pred_fallthru
      _
    %s448 = sld [smem:[#allocation5 + $0x1]]
    %p449 = scmp.gt.s32.totalorder %s448, 0
    %s450 = scalar_select %p449, %s448, 0
    %p451 = scmp.lt.s32.totalorder %s450, 2
    %s452 = scalar_select %p451, %s450, 2
    %s453 = scalar_lea.vmem %s1, %s452
    %s454 = scalar_lea.vmem [#allocation2], 8
    %s455 = scalar_lea.sflag [#allocation3], 8
    %p457 = scmp.lt.u32.totalorder 1, 8
    %p458 = pneg %p457
    // Predicated region
    $region254: #{tpu_custom_call.1} parent=1 // pred_check
      _
    $region255: #{tpu_custom_call.1} parent=1 // pred_check_branch
      %460 = sbr.rel (%p457) target = $region257
    $region256: #{tpu_custom_call.1} parent=1 // pred_region
      %s475 = sand.u32 1, 7
      %p476 = scmp.eq.s32.totalorder %s475, 0
      %p477 = pneg %p476
      // Predicated region
      $region269: #{tpu_custom_call.1} parent=256 // pred_check
        _
      $region270: #{tpu_custom_call.1} parent=256 // pred_check_branch
        %479 = sbr.rel (%p476) target = $region272
      $region271: #{tpu_custom_call.1} parent=256 // pred_region
        %s480 = sand.u32 1, 7
        %s481 = ssub.s32 1, %s480
        %s482 = scalar_lea.vmem %s453, %s481
        %s483 = ssub.s32 1, %s480
        %s484 = scalar_lea.vmem %s454, %s483 [#allocation2]
        %s485 = sshllo.u32 0, %s480
        loop: start=0, step=1, limit=1
        $region273: #{tpu_custom_call.1} parent=271 // loop_pre_header
          _
        $region274: #{tpu_custom_call.1} parent=271 // loop_header
          %s487 = sphi 0, %s491
          %p488 = scmp.ge.s32.totalorder %s487, 1
          %s492 = sphi %s482, %s482
          %s493 = sphi %s484, %s484
        $region275: #{tpu_custom_call.1} parent=271 // loop_header_branch
          %490 = sbr.rel (%p488) target = $region279
        $region276: #{tpu_custom_call.1} parent=271 // loop_body
          %v494 = vld [vmem:[%s492] sm:%s485]
          %495 = vst [vmem:[%s493] sm:%s485] %v494
        $region277: #{tpu_custom_call.1} parent=271 // loop_footer
          %s491 = sadd.s32 1, %s487
        $region278: #{tpu_custom_call.1} parent=271 // loop_footer_branch
          %486 = sbr.rel target = $region274
        $region279: #{tpu_custom_call.1} parent=271 // loop_exit
          _
      $region272: #{tpu_custom_call.1} parent=256 // pred_fallthru
        _
    $region257: #{tpu_custom_call.1} parent=1 // pred_fallthru
      _
    // Predicated region
    $region258: #{tpu_custom_call.1} parent=1 // pred_check
      %p461 = pneg %p457
    $region259: #{tpu_custom_call.1} parent=1 // pred_check_branch
      %463 = sbr.rel (%p461) target = $region261
    $region260: #{tpu_custom_call.1} parent=1 // pred_region
      %s464 = sshllo.u32 0, 1
      loop: start=0, step=1, limit=1
      $region262: #{tpu_custom_call.1} parent=260 // loop_pre_header
        _
      $region263: #{tpu_custom_call.1} parent=260 // loop_header
        %s466 = sphi 0, %s470
        %p467 = scmp.ge.s32.totalorder %s466, 1
        %s471 = sphi %s453, %s453
        %s472 = sphi %s454, %s454
      $region264: #{tpu_custom_call.1} parent=260 // loop_header_branch
        %469 = sbr.rel (%p467) target = $region268
      $region265: #{tpu_custom_call.1} parent=260 // loop_body
        %v473 = vld [vmem:[%s471] sm:%s464]
        %474 = vst [vmem:[%s472] sm:%s464] %v473
      $region266: #{tpu_custom_call.1} parent=260 // loop_footer
        %s470 = sadd.s32 1, %s466
      $region267: #{tpu_custom_call.1} parent=260 // loop_footer_branch
        %465 = sbr.rel target = $region263
      $region268: #{tpu_custom_call.1} parent=260 // loop_exit
        _
    $region261: #{tpu_custom_call.1} parent=1 // pred_fallthru
      _
    // Predicated region
    $region280: #{tpu_custom_call.1} parent=1 // pred_check
      _
    $region281: #{tpu_custom_call.1} parent=1 // pred_check_branch
      %498 = sbr.rel (0) target = $region283
    $region282: #{tpu_custom_call.1} parent=1 // pred_region
      %499 = vsyncadd %s455, 16
    $region283: #{tpu_custom_call.1} parent=1 // pred_fallthru
      _
    %s500 = sld [smem:[#allocation5 + $0x81]]
    %p501 = scmp.gt.s32.totalorder %s500, 0
    %s502 = scalar_select %p501, %s500, 0
    %p503 = scmp.lt.s32.totalorder %s502, 2
    %s504 = scalar_select %p503, %s502, 2
    %s505 = scalar_lea.vmem %s1, %s504
    %s506 = scalar_lea.vmem [#allocation2], 9
    %s507 = scalar_lea.sflag [#allocation3], 9
    %p509 = scmp.lt.u32.totalorder 1, 8
    %p510 = pneg %p509
    // Predicated region
    $region284: #{tpu_custom_call.1} parent=1 // pred_check
      _
    $region285: #{tpu_custom_call.1} parent=1 // pred_check_branch
      %512 = sbr.rel (%p509) target = $region287
    $region286: #{tpu_custom_call.1} parent=1 // pred_region
      %s527 = sand.u32 1, 7
      %p528 = scmp.eq.s32.totalorder %s527, 0
      %p529 = pneg %p528
      // Predicated region
      $region299: #{tpu_custom_call.1} parent=286 // pred_check
        _
      $region300: #{tpu_custom_call.1} parent=286 // pred_check_branch
        %531 = sbr.rel (%p528) target = $region302
      $region301: #{tpu_custom_call.1} parent=286 // pred_region
        %s532 = sand.u32 1, 7
        %s533 = ssub.s32 1, %s532
        %s534 = scalar_lea.vmem %s505, %s533
        %s535 = ssub.s32 1, %s532
        %s536 = scalar_lea.vmem %s506, %s535 [#allocation2]
        %s537 = sshllo.u32 0, %s532
        loop: start=0, step=1, limit=1
        $region303: #{tpu_custom_call.1} parent=301 // loop_pre_header
          _
        $region304: #{tpu_custom_call.1} parent=301 // loop_header
          %s539 = sphi 0, %s543
          %p540 = scmp.ge.s32.totalorder %s539, 1
          %s544 = sphi %s534, %s534
          %s545 = sphi %s536, %s536
        $region305: #{tpu_custom_call.1} parent=301 // loop_header_branch
          %542 = sbr.rel (%p540) target = $region309
        $region306: #{tpu_custom_call.1} parent=301 // loop_body
          %v546 = vld [vmem:[%s544] sm:%s537]
          %547 = vst [vmem:[%s545] sm:%s537] %v546
        $region307: #{tpu_custom_call.1} parent=301 // loop_footer
          %s543 = sadd.s32 1, %s539
        $region308: #{tpu_custom_call.1} parent=301 // loop_footer_branch
          %538 = sbr.rel target = $region304
        $region309: #{tpu_custom_call.1} parent=301 // loop_exit
          _
      $region302: #{tpu_custom_call.1} parent=286 // pred_fallthru
        _
    $region287: #{tpu_custom_call.1} parent=1 // pred_fallthru
      _
    // Predicated region
    $region288: #{tpu_custom_call.1} parent=1 // pred_check
      %p513 = pneg %p509
    $region289: #{tpu_custom_call.1} parent=1 // pred_check_branch
      %515 = sbr.rel (%p513) target = $region291
    $region290: #{tpu_custom_call.1} parent=1 // pred_region
      %s516 = sshllo.u32 0, 1
      loop: start=0, step=1, limit=1
      $region292: #{tpu_custom_call.1} parent=290 // loop_pre_header
        _
      $region293: #{tpu_custom_call.1} parent=290 // loop_header
        %s518 = sphi 0, %s522
        %p519 = scmp.ge.s32.totalorder %s518, 1
        %s523 = sphi %s505, %s505
        %s524 = sphi %s506, %s506
      $region294: #{tpu_custom_call.1} parent=290 // loop_header_branch
        %521 = sbr.rel (%p519) target = $region298
      $region295: #{tpu_custom_call.1} parent=290 // loop_body
        %v525 = vld [vmem:[%s523] sm:%s516]
        %526 = vst [vmem:[%s524] sm:%s516] %v525
      $region296: #{tpu_custom_call.1} parent=290 // loop_footer
        %s522 = sadd.s32 1, %s518
      $region297: #{tpu_custom_call.1} parent=290 // loop_footer_branch
        %517 = sbr.rel target = $region293
      $region298: #{tpu_custom_call.1} parent=290 // loop_exit
        _
    $region291: #{tpu_custom_call.1} parent=1 // pred_fallthru
      _
    // Predicated region
    $region310: #{tpu_custom_call.1} parent=1 // pred_check
      _
    $region311: #{tpu_custom_call.1} parent=1 // pred_check_branch
      %550 = sbr.rel (0) target = $region313
    $region312: #{tpu_custom_call.1} parent=1 // pred_region
      %551 = vsyncadd %s507, 16
    $region313: #{tpu_custom_call.1} parent=1 // pred_fallthru
      _
    %s552 = sld [smem:[#allocation5 + $0x101]]
    %p553 = scmp.gt.s32.totalorder %s552, 0
    %s554 = scalar_select %p553, %s552, 0
    %p555 = scmp.lt.s32.totalorder %s554, 2
    %s556 = scalar_select %p555, %s554, 2
    %s557 = scalar_lea.vmem %s1, %s556
    %s558 = scalar_lea.vmem [#allocation2], 10
    %s559 = scalar_lea.sflag [#allocation3], 10
    %p561 = scmp.lt.u32.totalorder 1, 8
    %p562 = pneg %p561
    // Predicated region
    $region314: #{tpu_custom_call.1} parent=1 // pred_check
      _
    $region315: #{tpu_custom_call.1} parent=1 // pred_check_branch
      %564 = sbr.rel (%p561) target = $region317
    $region316: #{tpu_custom_call.1} parent=1 // pred_region
      %s579 = sand.u32 1, 7
      %p580 = scmp.eq.s32.totalorder %s579, 0
      %p581 = pneg %p580
      // Predicated region
      $region329: #{tpu_custom_call.1} parent=316 // pred_check
        _
      $region330: #{tpu_custom_call.1} parent=316 // pred_check_branch
        %583 = sbr.rel (%p580) target = $region332
      $region331: #{tpu_custom_call.1} parent=316 // pred_region
        %s584 = sand.u32 1, 7
        %s585 = ssub.s32 1, %s584
        %s586 = scalar_lea.vmem %s557, %s585
        %s587 = ssub.s32 1, %s584
        %s588 = scalar_lea.vmem %s558, %s587 [#allocation2]
        %s589 = sshllo.u32 0, %s584
        loop: start=0, step=1, limit=1
        $region333: #{tpu_custom_call.1} parent=331 // loop_pre_header
          _
        $region334: #{tpu_custom_call.1} parent=331 // loop_header
          %s591 = sphi 0, %s595
          %p592 = scmp.ge.s32.totalorder %s591, 1
          %s596 = sphi %s586, %s586
          %s597 = sphi %s588, %s588
        $region335: #{tpu_custom_call.1} parent=331 // loop_header_branch
          %594 = sbr.rel (%p592) target = $region339
        $region336: #{tpu_custom_call.1} parent=331 // loop_body
          %v598 = vld [vmem:[%s596] sm:%s589]
          %599 = vst [vmem:[%s597] sm:%s589] %v598
        $region337: #{tpu_custom_call.1} parent=331 // loop_footer
          %s595 = sadd.s32 1, %s591
        $region338: #{tpu_custom_call.1} parent=331 // loop_footer_branch
          %590 = sbr.rel target = $region334
        $region339: #{tpu_custom_call.1} parent=331 // loop_exit
          _
      $region332: #{tpu_custom_call.1} parent=316 // pred_fallthru
        _
    $region317: #{tpu_custom_call.1} parent=1 // pred_fallthru
      _
    // Predicated region
    $region318: #{tpu_custom_call.1} parent=1 // pred_check
      %p565 = pneg %p561
    $region319: #{tpu_custom_call.1} parent=1 // pred_check_branch
      %567 = sbr.rel (%p565) target = $region321
    $region320: #{tpu_custom_call.1} parent=1 // pred_region
      %s568 = sshllo.u32 0, 1
      loop: start=0, step=1, limit=1
      $region322: #{tpu_custom_call.1} parent=320 // loop_pre_header
        _
      $region323: #{tpu_custom_call.1} parent=320 // loop_header
        %s570 = sphi 0, %s574
        %p571 = scmp.ge.s32.totalorder %s570, 1
        %s575 = sphi %s557, %s557
        %s576 = sphi %s558, %s558
      $region324: #{tpu_custom_call.1} parent=320 // loop_header_branch
        %573 = sbr.rel (%p571) target = $region328
      $region325: #{tpu_custom_call.1} parent=320 // loop_body
        %v577 = vld [vmem:[%s575] sm:%s568]
        %578 = vst [vmem:[%s576] sm:%s568] %v577
      $region326: #{tpu_custom_call.1} parent=320 // loop_footer
        %s574 = sadd.s32 1, %s570
      $region327: #{tpu_custom_call.1} parent=320 // loop_footer_branch
        %569 = sbr.rel target = $region323
      $region328: #{tpu_custom_call.1} parent=320 // loop_exit
        _
    $region321: #{tpu_custom_call.1} parent=1 // pred_fallthru
      _
    // Predicated region
    $region340: #{tpu_custom_call.1} parent=1 // pred_check
      _
    $region341: #{tpu_custom_call.1} parent=1 // pred_check_branch
      %602 = sbr.rel (0) target = $region343
    $region342: #{tpu_custom_call.1} parent=1 // pred_region
      %603 = vsyncadd %s559, 16
    $region343: #{tpu_custom_call.1} parent=1 // pred_fallthru
      _
    %s604 = sld [smem:[#allocation5 + $0x181]]
    %p605 = scmp.gt.s32.totalorder %s604, 0
    %s606 = scalar_select %p605, %s604, 0
    %p607 = scmp.lt.s32.totalorder %s606, 2
    %s608 = scalar_select %p607, %s606, 2
    %s609 = scalar_lea.vmem %s1, %s608
    %s610 = scalar_lea.vmem [#allocation2], 11
    %s611 = scalar_lea.sflag [#allocation3], 11
    %p613 = scmp.lt.u32.totalorder 1, 8
    %p614 = pneg %p613
    // Predicated region
    $region344: #{tpu_custom_call.1} parent=1 // pred_check
      _
    $region345: #{tpu_custom_call.1} parent=1 // pred_check_branch
      %616 = sbr.rel (%p613) target = $region347
    $region346: #{tpu_custom_call.1} parent=1 // pred_region
      %s631 = sand.u32 1, 7
      %p632 = scmp.eq.s32.totalorder %s631, 0
      %p633 = pneg %p632
      // Predicated region
      $region359: #{tpu_custom_call.1} parent=346 // pred_check
        _
      $region360: #{tpu_custom_call.1} parent=346 // pred_check_branch
        %635 = sbr.rel (%p632) target = $region362
      $region361: #{tpu_custom_call.1} parent=346 // pred_region
        %s636 = sand.u32 1, 7
        %s637 = ssub.s32 1, %s636
        %s638 = scalar_lea.vmem %s609, %s637
        %s639 = ssub.s32 1, %s636
        %s640 = scalar_lea.vmem %s610, %s639 [#allocation2]
        %s641 = sshllo.u32 0, %s636
        loop: start=0, step=1, limit=1
        $region363: #{tpu_custom_call.1} parent=361 // loop_pre_header
          _
        $region364: #{tpu_custom_call.1} parent=361 // loop_header
          %s643 = sphi 0, %s647
          %p644 = scmp.ge.s32.totalorder %s643, 1
          %s648 = sphi %s638, %s638
          %s649 = sphi %s640, %s640
        $region365: #{tpu_custom_call.1} parent=361 // loop_header_branch
          %646 = sbr.rel (%p644) target = $region369
        $region366: #{tpu_custom_call.1} parent=361 // loop_body
          %v650 = vld [vmem:[%s648] sm:%s641]
          %651 = vst [vmem:[%s649] sm:%s641] %v650
        $region367: #{tpu_custom_call.1} parent=361 // loop_footer
          %s647 = sadd.s32 1, %s643
        $region368: #{tpu_custom_call.1} parent=361 // loop_footer_branch
          %642 = sbr.rel target = $region364
        $region369: #{tpu_custom_call.1} parent=361 // loop_exit
          _
      $region362: #{tpu_custom_call.1} parent=346 // pred_fallthru
        _
    $region347: #{tpu_custom_call.1} parent=1 // pred_fallthru
      _
    // Predicated region
    $region348: #{tpu_custom_call.1} parent=1 // pred_check
      %p617 = pneg %p613
    $region349: #{tpu_custom_call.1} parent=1 // pred_check_branch
      %619 = sbr.rel (%p617) target = $region351
    $region350: #{tpu_custom_call.1} parent=1 // pred_region
      %s620 = sshllo.u32 0, 1
      loop: start=0, step=1, limit=1
      $region352: #{tpu_custom_call.1} parent=350 // loop_pre_header
        _
      $region353: #{tpu_custom_call.1} parent=350 // loop_header
        %s622 = sphi 0, %s626
        %p623 = scmp.ge.s32.totalorder %s622, 1
        %s627 = sphi %s609, %s609
        %s628 = sphi %s610, %s610
      $region354: #{tpu_custom_call.1} parent=350 // loop_header_branch
        %625 = sbr.rel (%p623) target = $region358
      $region355: #{tpu_custom_call.1} parent=350 // loop_body
        %v629 = vld [vmem:[%s627] sm:%s620]
        %630 = vst [vmem:[%s628] sm:%s620] %v629
      $region356: #{tpu_custom_call.1} parent=350 // loop_footer
        %s626 = sadd.s32 1, %s622
      $region357: #{tpu_custom_call.1} parent=350 // loop_footer_branch
        %621 = sbr.rel target = $region353
      $region358: #{tpu_custom_call.1} parent=350 // loop_exit
        _
    $region351: #{tpu_custom_call.1} parent=1 // pred_fallthru
      _
    // Predicated region
    $region370: #{tpu_custom_call.1} parent=1 // pred_check
      _
    $region371: #{tpu_custom_call.1} parent=1 // pred_check_branch
      %654 = sbr.rel (0) target = $region373
    $region372: #{tpu_custom_call.1} parent=1 // pred_region
      %655 = vsyncadd %s611, 16
    $region373: #{tpu_custom_call.1} parent=1 // pred_fallthru
      _
    %s656 = sld [smem:[#allocation5 + $0x201]]
    %p657 = scmp.gt.s32.totalorder %s656, 0
    %s658 = scalar_select %p657, %s656, 0
    %p659 = scmp.lt.s32.totalorder %s658, 2
    %s660 = scalar_select %p659, %s658, 2
    %s661 = scalar_lea.vmem %s1, %s660
    %s662 = scalar_lea.vmem [#allocation2], 12
    %s663 = scalar_lea.sflag [#allocation3], 12
    %p665 = scmp.lt.u32.totalorder 1, 8
    %p666 = pneg %p665
    // Predicated region
    $region374: #{tpu_custom_call.1} parent=1 // pred_check
      _
    $region375: #{tpu_custom_call.1} parent=1 // pred_check_branch
      %668 = sbr.rel (%p665) target = $region377
    $region376: #{tpu_custom_call.1} parent=1 // pred_region
      %s683 = sand.u32 1, 7
      %p684 = scmp.eq.s32.totalorder %s683, 0
      %p685 = pneg %p684
      // Predicated region
      $region389: #{tpu_custom_call.1} parent=376 // pred_check
        _
      $region390: #{tpu_custom_call.1} parent=376 // pred_check_branch
        %687 = sbr.rel (%p684) target = $region392
      $region391: #{tpu_custom_call.1} parent=376 // pred_region
        %s688 = sand.u32 1, 7
        %s689 = ssub.s32 1, %s688
        %s690 = scalar_lea.vmem %s661, %s689
        %s691 = ssub.s32 1, %s688
        %s692 = scalar_lea.vmem %s662, %s691 [#allocation2]
        %s693 = sshllo.u32 0, %s688
        loop: start=0, step=1, limit=1
        $region393: #{tpu_custom_call.1} parent=391 // loop_pre_header
          _
        $region394: #{tpu_custom_call.1} parent=391 // loop_header
          %s695 = sphi 0, %s699
          %p696 = scmp.ge.s32.totalorder %s695, 1
          %s700 = sphi %s690, %s690
          %s701 = sphi %s692, %s692
        $region395: #{tpu_custom_call.1} parent=391 // loop_header_branch
          %698 = sbr.rel (%p696) target = $region399
        $region396: #{tpu_custom_call.1} parent=391 // loop_body
          %v702 = vld [vmem:[%s700] sm:%s693]
          %703 = vst [vmem:[%s701] sm:%s693] %v702
        $region397: #{tpu_custom_call.1} parent=391 // loop_footer
          %s699 = sadd.s32 1, %s695
        $region398: #{tpu_custom_call.1} parent=391 // loop_footer_branch
          %694 = sbr.rel target = $region394
        $region399: #{tpu_custom_call.1} parent=391 // loop_exit
          _
      $region392: #{tpu_custom_call.1} parent=376 // pred_fallthru
        _
    $region377: #{tpu_custom_call.1} parent=1 // pred_fallthru
      _
    // Predicated region
    $region378: #{tpu_custom_call.1} parent=1 // pred_check
      %p669 = pneg %p665
    $region379: #{tpu_custom_call.1} parent=1 // pred_check_branch
      %671 = sbr.rel (%p669) target = $region381
    $region380: #{tpu_custom_call.1} parent=1 // pred_region
      %s672 = sshllo.u32 0, 1
      loop: start=0, step=1, limit=1
      $region382: #{tpu_custom_call.1} parent=380 // loop_pre_header
        _
      $region383: #{tpu_custom_call.1} parent=380 // loop_header
        %s674 = sphi 0, %s678
        %p675 = scmp.ge.s32.totalorder %s674, 1
        %s679 = sphi %s661, %s661
        %s680 = sphi %s662, %s662
      $region384: #{tpu_custom_call.1} parent=380 // loop_header_branch
        %677 = sbr.rel (%p675) target = $region388
      $region385: #{tpu_custom_call.1} parent=380 // loop_body
        %v681 = vld [vmem:[%s679] sm:%s672]
        %682 = vst [vmem:[%s680] sm:%s672] %v681
      $region386: #{tpu_custom_call.1} parent=380 // loop_footer
        %s678 = sadd.s32 1, %s674
      $region387: #{tpu_custom_call.1} parent=380 // loop_footer_branch
        %673 = sbr.rel target = $region383
      $region388: #{tpu_custom_call.1} parent=380 // loop_exit
        _
    $region381: #{tpu_custom_call.1} parent=1 // pred_fallthru
      _
    // Predicated region
    $region400: #{tpu_custom_call.1} parent=1 // pred_check
      _
    $region401: #{tpu_custom_call.1} parent=1 // pred_check_branch
      %706 = sbr.rel (0) target = $region403
    $region402: #{tpu_custom_call.1} parent=1 // pred_region
      %707 = vsyncadd %s663, 16
    $region403: #{tpu_custom_call.1} parent=1 // pred_fallthru
      _
    %s708 = sld [smem:[#allocation5 + $0x281]]
    %p709 = scmp.gt.s32.totalorder %s708, 0
    %s710 = scalar_select %p709, %s708, 0
    %p711 = scmp.lt.s32.totalorder %s710, 2
    %s712 = scalar_select %p711, %s710, 2
    %s713 = scalar_lea.vmem %s1, %s712
    %s714 = scalar_lea.vmem [#allocation2], 13
    %s715 = scalar_lea.sflag [#allocation3], 13
    %p717 = scmp.lt.u32.totalorder 1, 8
    %p718 = pneg %p717
    // Predicated region
    $region404: #{tpu_custom_call.1} parent=1 // pred_check
      _
    $region405: #{tpu_custom_call.1} parent=1 // pred_check_branch
      %720 = sbr.rel (%p717) target = $region407
    $region406: #{tpu_custom_call.1} parent=1 // pred_region
      %s735 = sand.u32 1, 7
      %p736 = scmp.eq.s32.totalorder %s735, 0
      %p737 = pneg %p736
      // Predicated region
      $region419: #{tpu_custom_call.1} parent=406 // pred_check
        _
      $region420: #{tpu_custom_call.1} parent=406 // pred_check_branch
        %739 = sbr.rel (%p736) target = $region422
      $region421: #{tpu_custom_call.1} parent=406 // pred_region
        %s740 = sand.u32 1, 7
        %s741 = ssub.s32 1, %s740
        %s742 = scalar_lea.vmem %s713, %s741
        %s743 = ssub.s32 1, %s740
        %s744 = scalar_lea.vmem %s714, %s743 [#allocation2]
        %s745 = sshllo.u32 0, %s740
        loop: start=0, step=1, limit=1
        $region423: #{tpu_custom_call.1} parent=421 // loop_pre_header
          _
        $region424: #{tpu_custom_call.1} parent=421 // loop_header
          %s747 = sphi 0, %s751
          %p748 = scmp.ge.s32.totalorder %s747, 1
          %s752 = sphi %s742, %s742
          %s753 = sphi %s744, %s744
        $region425: #{tpu_custom_call.1} parent=421 // loop_header_branch
          %750 = sbr.rel (%p748) target = $region429
        $region426: #{tpu_custom_call.1} parent=421 // loop_body
          %v754 = vld [vmem:[%s752] sm:%s745]
          %755 = vst [vmem:[%s753] sm:%s745] %v754
        $region427: #{tpu_custom_call.1} parent=421 // loop_footer
          %s751 = sadd.s32 1, %s747
        $region428: #{tpu_custom_call.1} parent=421 // loop_footer_branch
          %746 = sbr.rel target = $region424
        $region429: #{tpu_custom_call.1} parent=421 // loop_exit
          _
      $region422: #{tpu_custom_call.1} parent=406 // pred_fallthru
        _
    $region407: #{tpu_custom_call.1} parent=1 // pred_fallthru
      _
    // Predicated region
    $region408: #{tpu_custom_call.1} parent=1 // pred_check
      %p721 = pneg %p717
    $region409: #{tpu_custom_call.1} parent=1 // pred_check_branch
      %723 = sbr.rel (%p721) target = $region411
    $region410: #{tpu_custom_call.1} parent=1 // pred_region
      %s724 = sshllo.u32 0, 1
      loop: start=0, step=1, limit=1
      $region412: #{tpu_custom_call.1} parent=410 // loop_pre_header
        _
      $region413: #{tpu_custom_call.1} parent=410 // loop_header
        %s726 = sphi 0, %s730
        %p727 = scmp.ge.s32.totalorder %s726, 1
        %s731 = sphi %s713, %s713
        %s732 = sphi %s714, %s714
      $region414: #{tpu_custom_call.1} parent=410 // loop_header_branch
        %729 = sbr.rel (%p727) target = $region418
      $region415: #{tpu_custom_call.1} parent=410 // loop_body
        %v733 = vld [vmem:[%s731] sm:%s724]
        %734 = vst [vmem:[%s732] sm:%s724] %v733
      $region416: #{tpu_custom_call.1} parent=410 // loop_footer
        %s730 = sadd.s32 1, %s726
      $region417: #{tpu_custom_call.1} parent=410 // loop_footer_branch
        %725 = sbr.rel target = $region413
      $region418: #{tpu_custom_call.1} parent=410 // loop_exit
        _
    $region411: #{tpu_custom_call.1} parent=1 // pred_fallthru
      _
    // Predicated region
    $region430: #{tpu_custom_call.1} parent=1 // pred_check
      _
    $region431: #{tpu_custom_call.1} parent=1 // pred_check_branch
      %758 = sbr.rel (0) target = $region433
    $region432: #{tpu_custom_call.1} parent=1 // pred_region
      %759 = vsyncadd %s715, 16
    $region433: #{tpu_custom_call.1} parent=1 // pred_fallthru
      _
    %s760 = sld [smem:[#allocation5 + $0x301]]
    %p761 = scmp.gt.s32.totalorder %s760, 0
    %s762 = scalar_select %p761, %s760, 0
    %p763 = scmp.lt.s32.totalorder %s762, 2
    %s764 = scalar_select %p763, %s762, 2
    %s765 = scalar_lea.vmem %s1, %s764
    %s766 = scalar_lea.vmem [#allocation2], 14
    %s767 = scalar_lea.sflag [#allocation3], 14
    %p769 = scmp.lt.u32.totalorder 1, 8
    %p770 = pneg %p769
    // Predicated region
    $region434: #{tpu_custom_call.1} parent=1 // pred_check
      _
    $region435: #{tpu_custom_call.1} parent=1 // pred_check_branch
      %772 = sbr.rel (%p769) target = $region437
    $region436: #{tpu_custom_call.1} parent=1 // pred_region
      %s787 = sand.u32 1, 7
      %p788 = scmp.eq.s32.totalorder %s787, 0
      %p789 = pneg %p788
      // Predicated region
      $region449: #{tpu_custom_call.1} parent=436 // pred_check
        _
      $region450: #{tpu_custom_call.1} parent=436 // pred_check_branch
        %791 = sbr.rel (%p788) target = $region452
      $region451: #{tpu_custom_call.1} parent=436 // pred_region
        %s792 = sand.u32 1, 7
        %s793 = ssub.s32 1, %s792
        %s794 = scalar_lea.vmem %s765, %s793
        %s795 = ssub.s32 1, %s792
        %s796 = scalar_lea.vmem %s766, %s795 [#allocation2]
        %s797 = sshllo.u32 0, %s792
        loop: start=0, step=1, limit=1
        $region453: #{tpu_custom_call.1} parent=451 // loop_pre_header
          _
        $region454: #{tpu_custom_call.1} parent=451 // loop_header
          %s799 = sphi 0, %s803
          %p800 = scmp.ge.s32.totalorder %s799, 1
          %s804 = sphi %s794, %s794
          %s805 = sphi %s796, %s796
        $region455: #{tpu_custom_call.1} parent=451 // loop_header_branch
          %802 = sbr.rel (%p800) target = $region459
        $region456: #{tpu_custom_call.1} parent=451 // loop_body
          %v806 = vld [vmem:[%s804] sm:%s797]
          %807 = vst [vmem:[%s805] sm:%s797] %v806
        $region457: #{tpu_custom_call.1} parent=451 // loop_footer
          %s803 = sadd.s32 1, %s799
        $region458: #{tpu_custom_call.1} parent=451 // loop_footer_branch
          %798 = sbr.rel target = $region454
        $region459: #{tpu_custom_call.1} parent=451 // loop_exit
          _
      $region452: #{tpu_custom_call.1} parent=436 // pred_fallthru
        _
    $region437: #{tpu_custom_call.1} parent=1 // pred_fallthru
      _
    // Predicated region
    $region438: #{tpu_custom_call.1} parent=1 // pred_check
      %p773 = pneg %p769
    $region439: #{tpu_custom_call.1} parent=1 // pred_check_branch
      %775 = sbr.rel (%p773) target = $region441
    $region440: #{tpu_custom_call.1} parent=1 // pred_region
      %s776 = sshllo.u32 0, 1
      loop: start=0, step=1, limit=1
      $region442: #{tpu_custom_call.1} parent=440 // loop_pre_header
        _
      $region443: #{tpu_custom_call.1} parent=440 // loop_header
        %s778 = sphi 0, %s782
        %p779 = scmp.ge.s32.totalorder %s778, 1
        %s783 = sphi %s765, %s765
        %s784 = sphi %s766, %s766
      $region444: #{tpu_custom_call.1} parent=440 // loop_header_branch
        %781 = sbr.rel (%p779) target = $region448
      $region445: #{tpu_custom_call.1} parent=440 // loop_body
        %v785 = vld [vmem:[%s783] sm:%s776]
        %786 = vst [vmem:[%s784] sm:%s776] %v785
      $region446: #{tpu_custom_call.1} parent=440 // loop_footer
        %s782 = sadd.s32 1, %s778
      $region447: #{tpu_custom_call.1} parent=440 // loop_footer_branch
        %777 = sbr.rel target = $region443
      $region448: #{tpu_custom_call.1} parent=440 // loop_exit
        _
    $region441: #{tpu_custom_call.1} parent=1 // pred_fallthru
      _
    // Predicated region
    $region460: #{tpu_custom_call.1} parent=1 // pred_check
      _
    $region461: #{tpu_custom_call.1} parent=1 // pred_check_branch
      %810 = sbr.rel (0) target = $region463
    $region462: #{tpu_custom_call.1} parent=1 // pred_region
      %811 = vsyncadd %s767, 16
    $region463: #{tpu_custom_call.1} parent=1 // pred_fallthru
      _
    %s812 = sld [smem:[#allocation5 + $0x381]]
    %p813 = scmp.gt.s32.totalorder %s812, 0
    %s814 = scalar_select %p813, %s812, 0
    %p815 = scmp.lt.s32.totalorder %s814, 2
    %s816 = scalar_select %p815, %s814, 2
    %s817 = scalar_lea.vmem %s1, %s816
    %s818 = scalar_lea.vmem [#allocation2], 15
    %s819 = scalar_lea.sflag [#allocation3], 15
    %p821 = scmp.lt.u32.totalorder 1, 8
    %p822 = pneg %p821
    // Predicated region
    $region464: #{tpu_custom_call.1} parent=1 // pred_check
      _
    $region465: #{tpu_custom_call.1} parent=1 // pred_check_branch
      %824 = sbr.rel (%p821) target = $region467
    $region466: #{tpu_custom_call.1} parent=1 // pred_region
      %s839 = sand.u32 1, 7
      %p840 = scmp.eq.s32.totalorder %s839, 0
      %p841 = pneg %p840
      // Predicated region
      $region479: #{tpu_custom_call.1} parent=466 // pred_check
        _
      $region480: #{tpu_custom_call.1} parent=466 // pred_check_branch
        %843 = sbr.rel (%p840) target = $region482
      $region481: #{tpu_custom_call.1} parent=466 // pred_region
        %s844 = sand.u32 1, 7
        %s845 = ssub.s32 1, %s844
        %s846 = scalar_lea.vmem %s817, %s845
        %s847 = ssub.s32 1, %s844
        %s848 = scalar_lea.vmem %s818, %s847 [#allocation2]
        %s849 = sshllo.u32 0, %s844
        loop: start=0, step=1, limit=1
        $region483: #{tpu_custom_call.1} parent=481 // loop_pre_header
          _
        $region484: #{tpu_custom_call.1} parent=481 // loop_header
          %s851 = sphi 0, %s855
          %p852 = scmp.ge.s32.totalorder %s851, 1
          %s856 = sphi %s846, %s846
          %s857 = sphi %s848, %s848
        $region485: #{tpu_custom_call.1} parent=481 // loop_header_branch
          %854 = sbr.rel (%p852) target = $region489
        $region486: #{tpu_custom_call.1} parent=481 // loop_body
          %v858 = vld [vmem:[%s856] sm:%s849]
          %859 = vst [vmem:[%s857] sm:%s849] %v858
        $region487: #{tpu_custom_call.1} parent=481 // loop_footer
          %s855 = sadd.s32 1, %s851
        $region488: #{tpu_custom_call.1} parent=481 // loop_footer_branch
          %850 = sbr.rel target = $region484
        $region489: #{tpu_custom_call.1} parent=481 // loop_exit
          _
      $region482: #{tpu_custom_call.1} parent=466 // pred_fallthru
        _
    $region467: #{tpu_custom_call.1} parent=1 // pred_fallthru
      _
    // Predicated region
    $region468: #{tpu_custom_call.1} parent=1 // pred_check
      %p825 = pneg %p821
    $region469: #{tpu_custom_call.1} parent=1 // pred_check_branch
      %827 = sbr.rel (%p825) target = $region471
    $region470: #{tpu_custom_call.1} parent=1 // pred_region
      %s828 = sshllo.u32 0, 1
      loop: start=0, step=1, limit=1
      $region472: #{tpu_custom_call.1} parent=470 // loop_pre_header
        _
      $region473: #{tpu_custom_call.1} parent=470 // loop_header
        %s830 = sphi 0, %s834
        %p831 = scmp.ge.s32.totalorder %s830, 1
        %s835 = sphi %s817, %s817
        %s836 = sphi %s818, %s818
      $region474: #{tpu_custom_call.1} parent=470 // loop_header_branch
        %833 = sbr.rel (%p831) target = $region478
      $region475: #{tpu_custom_call.1} parent=470 // loop_body
        %v837 = vld [vmem:[%s835] sm:%s828]
        %838 = vst [vmem:[%s836] sm:%s828] %v837
      $region476: #{tpu_custom_call.1} parent=470 // loop_footer
        %s834 = sadd.s32 1, %s830
      $region477: #{tpu_custom_call.1} parent=470 // loop_footer_branch
        %829 = sbr.rel target = $region473
      $region478: #{tpu_custom_call.1} parent=470 // loop_exit
        _
    $region471: #{tpu_custom_call.1} parent=1 // pred_fallthru
      _
    // Predicated region
    $region490: #{tpu_custom_call.1} parent=1 // pred_check
      _
    $region491: #{tpu_custom_call.1} parent=1 // pred_check_branch
      %862 = sbr.rel (0) target = $region493
    $region492: #{tpu_custom_call.1} parent=1 // pred_region
      %863 = vsyncadd %s819, 16
    $region493: #{tpu_custom_call.1} parent=1 // pred_fallthru
      _
    %s864 = smul.u32 1, 1
    %s865 = sshll.u32 %s864, 4
    %866 = dma.done [#allocation3], %s865
    %s867 = sshll.u32 %s864, 4
    %868 = dma.done %s91, %s867
    %s869 = sshll.u32 %s864, 4
    %870 = dma.done %s143, %s869
    %s871 = sshll.u32 %s864, 4
    %872 = dma.done %s195, %s871
    %s873 = sshll.u32 %s864, 4
    %874 = dma.done %s247, %s873
    %s875 = sshll.u32 %s864, 4
    %876 = dma.done %s299, %s875
    %s877 = sshll.u32 %s864, 4
    %878 = dma.done %s351, %s877
    %s879 = sshll.u32 %s864, 4
    %880 = dma.done %s403, %s879
    %s881 = sshll.u32 %s864, 4
    %882 = dma.done %s455, %s881
    %s883 = sshll.u32 %s864, 4
    %884 = dma.done %s507, %s883
    %s885 = sshll.u32 %s864, 4
    %886 = dma.done %s559, %s885
    %s887 = sshll.u32 %s864, 4
    %888 = dma.done %s611, %s887
    %s889 = sshll.u32 %s864, 4
    %890 = dma.done %s663, %s889
    %s891 = sshll.u32 %s864, 4
    %892 = dma.done %s715, %s891
    %s893 = sshll.u32 %s864, 4
    %894 = dma.done %s767, %s893
    %s895 = sshll.u32 %s864, 4
    %896 = dma.done %s819, %s895
    %v897 = vld [vmem:[#allocation2] sm:$0xff]
    %v898 = vld [vmem:[%s454] sm:$0xff]
    %v899 = vadd.f32 %v897, %v898
    %v900 = vld [vmem:[#allocation6] sm:$0xff]
    %v901 = vld [vmem:[#allocation6 + $0x8] sm:$0xff]
    %v902 = vld [vmem:[#allocation6 + $0x10] sm:$0xff]
    %v903 = vld [vmem:[#allocation6 + $0x18] sm:$0xff]
    %v904 = vld [vmem:[#allocation6 + $0x20] sm:$0xff]
    %v905 = vld [vmem:[#allocation6 + $0x28] sm:$0xff]
    %v906 = vld [vmem:[#allocation6 + $0x30] sm:$0xff]
    %v907 = vld [vmem:[#allocation6 + $0x38] sm:$0xff]
    %v908 = vld [vmem:[#allocation6 + $0x40] sm:$0xff]
    %v909 = vld [vmem:[#allocation6 + $0x48] sm:$0xff]
    %v910 = vld [vmem:[#allocation6 + $0x50] sm:$0xff]
    %v911 = vld [vmem:[#allocation6 + $0x58] sm:$0xff]
    %v912 = vld [vmem:[#allocation6 + $0x60] sm:$0xff]
    %v913 = vld [vmem:[#allocation6 + $0x68] sm:$0xff]
    %v914 = vld [vmem:[#allocation6 + $0x70] sm:$0xff]
    %v915 = vld [vmem:[#allocation6 + $0x78] sm:$0xff]
    %v916 = vld [vmem:[%s3] sm:$0x1]
    %v918 = vlaneseq
    %v919 = vshrl.u32 %v918, 7
    %v920 = vsub.s32 0, %v919
    %v921 = vrot.slane %v916, %v920
    %923 = vmatprep.subr.mxu0 0.0
    %924 = vmatpush1.msra.mxu0 %v900
    %925 = vmatprep.subr.mxu0 0.0
    %926 = vmatpush1.msra.mxu0 %v901
    %927 = vmatprep.subr.mxu0 0.0
    %928 = vmatpush1.msra.mxu0 %v902
    %929 = vmatprep.subr.mxu0 0.0
    %930 = vmatpush1.msra.mxu0 %v903
    %931 = vmatprep.subr.mxu0 0.0
    %932 = vmatpush1.msra.mxu0 %v904
    %933 = vmatprep.subr.mxu0 0.0
    %934 = vmatpush1.msra.mxu0 %v905
    %935 = vmatprep.subr.mxu0 0.0
    %936 = vmatpush1.msra.mxu0 %v906
    %937 = vmatprep.subr.mxu0 0.0
    %938 = vmatpush1.msra.mxu0 %v907
    %939 = vmatprep.subr.mxu0 0.0
    %940 = vmatpush1.msra.mxu0 %v908
    %941 = vmatprep.subr.mxu0 0.0
    %942 = vmatpush1.msra.mxu0 %v909
    %943 = vmatprep.subr.mxu0 0.0
    %944 = vmatpush1.msra.mxu0 %v910
    %945 = vmatprep.subr.mxu0 0.0
    %946 = vmatpush1.msra.mxu0 %v911
    %947 = vmatprep.subr.mxu0 0.0
    %948 = vmatpush1.msra.mxu0 %v912
    %949 = vmatprep.subr.mxu0 0.0
    %950 = vmatpush1.msra.mxu0 %v913
    %951 = vmatprep.subr.mxu0 0.0
    %952 = vmatpush1.msra.mxu0 %v914
    %953 = vmatprep.subr.mxu0 0.0
    %954 = vmatpush1.msra.mxu0 %v915
    %955 = vmatprep.subr.mxu0 0.0
    %956 = vmatpush1.msra.mxu0 0.0
    %957 = vmatprep.subr.mxu0 0.0
    %958 = vmatpush1.msra.mxu0 0.0
    %959 = vmatprep.subr.mxu0 0.0
    %960 = vmatpush1.msra.mxu0 0.0
    %961 = vmatprep.subr.mxu0 0.0
    %962 = vmatpush1.msra.mxu0 0.0
    %963 = vmatprep.subr.mxu0 0.0
    %964 = vmatpush1.msra.mxu0 0.0
    %965 = vmatprep.subr.mxu0 0.0
    %966 = vmatpush1.msra.mxu0 0.0
    %967 = vmatprep.subr.mxu0 0.0
    %968 = vmatpush1.msra.mxu0 0.0
    %969 = vmatprep.subr.mxu0 0.0
    %970 = vmatpush1.msra.mxu0 0.0
    %971 = vmatprep.subr.mxu0 0.0
    %972 = vmatpush1.msra.mxu0 0.0
    %973 = vmatprep.subr.mxu0 0.0
    %974 = vmatpush1.msra.mxu0 0.0
    %975 = vmatprep.subr.mxu0 0.0
    %976 = vmatpush1.msra.mxu0 0.0
    %977 = vmatprep.subr.mxu0 0.0
    %978 = vmatpush1.msra.mxu0 0.0
    %979 = vmatprep.subr.mxu0 0.0
    %980 = vmatpush1.msra.mxu0 0.0
    %981 = vmatprep.subr.mxu0 0.0
    %982 = vmatpush1.msra.mxu0 0.0
    %983 = vmatprep.subr.mxu0 0.0
    %984 = vmatpush1.msra.mxu0 0.0
    %985 = vmatprep.subr.mxu0 0.0
    %986 = vmatpush1.msra.mxu0 0.0
    %987 = vmatprep.mubr.f32.mxu0 0.0
    %988 = vmatmul.mubr.f32.gmra.mrb[0].mxu0 %v899
    %v989 = vpop.f32.mrb[0].mxu0
    %v990 = vadd.f32 %v921, %v989
    %v991 = vpop.f32.mrb[0].mxu0
    %992 = vdwg.mxu0
    %v993 = vmax.f32 %v990, 0.0
    %994 = vst [vmem:[#allocation9] sm:$0xff] %v993
    // Predicated region
    $region494: #{tpu_custom_call.1} parent=1 // pred_check
      _
    $region495: #{tpu_custom_call.1} parent=1 // pred_check_branch
      %996 = sbr.rel (0) target = $region497
    $region496: #{tpu_custom_call.1} parent=1 // pred_region
      %s998 = ssub.s32 128, 128
      %999 = vsyncadd [#allocation8], %s998
      %s1001 = sshll.u32 [#allocation9], 4
      %s1002 = int_to_ptr.vmem [resolvable:$true] %s1001
      %1004 = dma.vmem_to_hbm [thread:$0]  %s1002, 128, %s4, [#allocation8]
    $region497: #{tpu_custom_call.1} parent=1 // pred_fallthru
      _
    // Predicated region
    $region498: #{tpu_custom_call.1} parent=1 // pred_check
      _
    $region499: #{tpu_custom_call.1} parent=1 // pred_check_branch
      %1006 = sbr.rel (0) target = $region501
    $region500: #{tpu_custom_call.1} parent=1 // pred_region
      %1007 = dma.done [#allocation8], 128
    $region501: #{tpu_custom_call.1} parent=1 // pred_fallthru
      _
    %1008 = vsyncpa [#allocation7], 1
    %1009 = vsyncpa [#allocation8], 1
  %1010 = vsyncmov [#allocation3]
  %s1011 = vpop.sfrf %1010
  %p1012 = scmp.eq.s32.totalorder %s1011, 0
  %p1013 = pneg %p1012
  %1015 = shalt.err (%p1013)
  %s1016 = scalar_lea.sflag [#allocation3], 1
  %1017 = vsyncmov %s1016
  %s1018 = vpop.sfrf %1017
  %p1019 = scmp.eq.s32.totalorder %s1018, 0
  %p1020 = pneg %p1019
  %1022 = shalt.err (%p1020)
  %s1023 = scalar_lea.sflag [#allocation3], 2
  %1024 = vsyncmov %s1023
  %s1025 = vpop.sfrf %1024
  %p1026 = scmp.eq.s32.totalorder %s1025, 0
  %p1027 = pneg %p1026
  %1029 = shalt.err (%p1027)
  %s1030 = scalar_lea.sflag [#allocation3], 3
  %1031 = vsyncmov %s1030
  %s1032 = vpop.sfrf %1031
  %p1033 = scmp.eq.s32.totalorder %s1032, 0
  %p1034 = pneg %p1033
  %1036 = shalt.err (%p1034)
  %s1037 = scalar_lea.sflag [#allocation3], 4
  %1038 = vsyncmov %s1037
  %s1039 = vpop.sfrf %1038
  %p1040 = scmp.eq.s32.totalorder %s1039, 0
  %p1041 = pneg %p1040
  %1043 = shalt.err (%p1041)
  %s1044 = scalar_lea.sflag [#allocation3], 5
  %1045 = vsyncmov %s1044
  %s1046 = vpop.sfrf %1045
  %p1047 = scmp.eq.s32.totalorder %s1046, 0
  %p1048 = pneg %p1047
  %1050 = shalt.err (%p1048)
  %s1051 = scalar_lea.sflag [#allocation3], 6
  %1052 = vsyncmov %s1051
  %s1053 = vpop.sfrf %1052
  %p1054 = scmp.eq.s32.totalorder %s1053, 0
  %p1055 = pneg %p1054
  %1057 = shalt.err (%p1055)
  %s1058 = scalar_lea.sflag [#allocation3], 7
  %1059 = vsyncmov %s1058
  %s1060 = vpop.sfrf %1059
  %p1061 = scmp.eq.s32.totalorder %s1060, 0
  %p1062 = pneg %p1061
  %1064 = shalt.err (%p1062)
  %s1065 = scalar_lea.sflag [#allocation3], 8
  %1066 = vsyncmov %s1065
  %s1067 = vpop.sfrf %1066
  %p1068 = scmp.eq.s32.totalorder %s1067, 0
  %p1069 = pneg %p1068
  %1071 = shalt.err (%p1069)
  %s1072 = scalar_lea.sflag [#allocation3], 9
  %1073 = vsyncmov %s1072
  %s1074 = vpop.sfrf %1073
  %p1075 = scmp.eq.s32.totalorder %s1074, 0
  %p1076 = pneg %p1075
  %1078 = shalt.err (%p1076)
  %s1079 = scalar_lea.sflag [#allocation3], 10
  %1080 = vsyncmov %s1079
  %s1081 = vpop.sfrf %1080
  %p1082 = scmp.eq.s32.totalorder %s1081, 0
  %p1083 = pneg %p1082
  %1085 = shalt.err (%p1083)
  %s1086 = scalar_lea.sflag [#allocation3], 11
  %1087 = vsyncmov %s1086
  %s1088 = vpop.sfrf %1087
  %p1089 = scmp.eq.s32.totalorder %s1088, 0
  %p1090 = pneg %p1089
  %1092 = shalt.err (%p1090)
  %s1093 = scalar_lea.sflag [#allocation3], 12
  %1094 = vsyncmov %s1093
  %s1095 = vpop.sfrf %1094
  %p1096 = scmp.eq.s32.totalorder %s1095, 0
  %p1097 = pneg %p1096
  %1099 = shalt.err (%p1097)
  %s1100 = scalar_lea.sflag [#allocation3], 13
  %1101 = vsyncmov %s1100
  %s1102 = vpop.sfrf %1101
  %p1103 = scmp.eq.s32.totalorder %s1102, 0
  %p1104 = pneg %p1103
  %1106 = shalt.err (%p1104)
  %s1107 = scalar_lea.sflag [#allocation3], 14
  %1108 = vsyncmov %s1107
  %s1109 = vpop.sfrf %1108
  %p1110 = scmp.eq.s32.totalorder %s1109, 0
  %p1111 = pneg %p1110
  %1113 = shalt.err (%p1111)
  %s1114 = scalar_lea.sflag [#allocation3], 15
  %1115 = vsyncmov %s1114
  %s1116 = vpop.sfrf %1115
  %p1117 = scmp.eq.s32.totalorder %s1116, 0
  %p1118 = pneg %p1117
  %1120 = shalt.err (%p1118)

</llo_original>
